<compile_context>
chip_gen: v6e
topology: v6e:2x2x1
jax: 0.10.0
libtpu: 0.0.40
codegen_flags: <defaults>
</compile_context>

<pallas_src>
import functools

import jax
import jax.numpy as jnp
from jax import lax
from jax.experimental import pallas as pl
from jax.experimental.pallas import tpu as pltpu


def _multibox_loss_kernel(loc_ref, conf_ref, loc_gt_ref, labels_ref, out_ref,
                          *, neg_pos):
    # Per grid step: one batch element, priors on the lane axis.
    loc = loc_ref[0].astype(jnp.float32)        # (4, P)
    conf = conf_ref[0].astype(jnp.float32)      # (C, P)
    loc_gt = loc_gt_ref[0].astype(jnp.float32)  # (4, P)
    labels = labels_ref[0]                      # (1, P) int32
    C, P = conf.shape

    pos = labels > 0                            # (1, P) bool
    posf = pos.astype(jnp.float32)
    num_pos_i = jnp.sum(pos.astype(jnp.int32))  # scalar int32
    num_pos_f = num_pos_i.astype(jnp.float32)

    # ---- localization loss: SmoothL1(reduction='sum') over positive priors ----
    diff = loc - loc_gt
    ad = jnp.abs(diff)
    sl1 = jnp.where(ad < 1.0, 0.5 * diff * diff, ad - 0.5)      # (4, P)
    loss_loc = jnp.sum(sl1 * posf)

    # ---- per-prior cross entropy: logsumexp_c(conf) - conf[gt] ----
    cmax = jnp.max(conf, axis=0, keepdims=True)                 # (1, P)
    sum_exp = jnp.sum(jnp.exp(conf - cmax), axis=0, keepdims=True)
    lse = jnp.log(sum_exp) + cmax                               # (1, P)
    # gt-logit gather: parallel one-hot on the dense (C,P) tile + sublane sum
    # (no serial length-C select chain, no (P,C) one-hot gather in HBM).
    class_iota = lax.broadcasted_iota(jnp.int32, (C, P), 0)     # (C, P)
    onehot = labels == class_iota                               # (C, P) bool
    conf_at_gt = jnp.sum(jnp.where(onehot, conf, 0.0),
                         axis=0, keepdims=True)                 # (1, P)
    ce = lse - conf_at_gt                                       # (1, P), >= 0

    # ---- hard negative mining: sum of top-k mining values via threshold search ----
    # torch: zero CE at positives, sort descending, keep top num_neg.  The
    # summed loss over that selection equals the sum of the k largest mining
    # values (ties contribute identical amounts).  Nonnegative f32 ordering ==
    # int32 bit ordering, so an MSB-first search over the bit pattern finds the
    # k-th largest value exactly.  Each round resolves two bits with three
    # monotone counts (mask(>=c3) <= mask(>=c2) <= mask(>=c1)) and one scalar
    # decision, so only 16 serialized reduce->scalar round trips total.
    mining = jnp.maximum(jnp.where(pos, 0.0, ce), 0.0)          # (1, P), >= 0
    mbits = pltpu.bitcast(mining, jnp.int32)                    # order-preserving
    k = jnp.minimum(neg_pos * num_pos_i, P - 1)                 # scalar int32

    def count_ge(cand):
        return jnp.sum((mbits >= cand).astype(jnp.int32))

    t_bits = jnp.int32(0)
    for hi in range(30, 0, -2):                                 # bits (30,29)..(2,1)
        lo = hi - 1
        c2 = t_bits | jnp.int32(1 << hi)                        # hi set, lo clear
        c1 = t_bits | jnp.int32(1 << lo)                        # hi clear, lo set
        c3 = c2 | jnp.int32(1 << lo)                            # both set
        n3 = count_ge(c3)
        n2 = count_ge(c2)
        n1 = count_ge(c1)
        # Equivalent to two sequential single-bit greedy steps (counts monotone).
        t_bits = jnp.where(n3 >= k, c3,
                 jnp.where(n2 >= k, c2,
                 jnp.where(n1 >= k, c1, t_bits)))
    c0 = t_bits | jnp.int32(1)                                  # final bit 0
    t_bits = jnp.where(count_ge(c0) >= k, c0, t_bits)
    # t_bits == bits of the k-th largest mining value (k >= 1);
    # for k == 0 it saturates to 0x7fffffff and every term below is 0.
    gt_mask = mbits > t_bits
    c_gt = jnp.sum(gt_mask.astype(jnp.int32))                   # strictly greater (< k)
    sum_gt = jnp.sum(jnp.where(gt_mask, mining, 0.0))
    v_k = jnp.max(jnp.where(mbits == t_bits, mining, 0.0))      # threshold value
    topk_sum = sum_gt + (k - c_gt).astype(jnp.float32) * v_k

    # ---- confidence loss (CrossEntropy, reduction='sum') over pos | hard-neg ----
    loss_conf = jnp.sum(ce * posf) + topk_sum

    # ---- lane-dense per-batch partial output: [loss_loc, loss_conf, num_pos, 0...] ----
    lane = lax.broadcasted_iota(jnp.int32, (1, 128), 1)
    out_ref[0] = (jnp.where(lane == 0, loss_loc, 0.0)
                  + jnp.where(lane == 1, loss_conf, 0.0)
                  + jnp.where(lane == 2, num_pos_f, 0.0))


def multibox_loss(loc, conf, targets, *, num_classes, neg_pos):
    """JAX/Pallas equivalent of MultiBoxLoss.forward((loc, conf), targets).

    loc: (B, P, 4), conf: (B, P, C), targets: (B, P, 5) = [encoded offsets, label].
    """
    B, P, C = conf.shape
    assert C == num_classes

    # Layout plumbing: priors -> lane axis.  Storage dtype is preserved (bf16
    # inputs stay bf16 over HBM/DMA; the kernel upcasts to f32 for compute).
    loc_t = jnp.swapaxes(loc, 1, 2)                              # (B, 4, P)
    conf_t = jnp.swapaxes(conf, 1, 2)                            # (B, C, P)
    loc_gt_t = jnp.swapaxes(targets[..., :4], 1, 2)              # (B, 4, P)
    labels = targets[..., 4].astype(jnp.int32)[:, None, :]       # (B, 1, P)

    kernel = functools.partial(_multibox_loss_kernel, neg_pos=neg_pos)
    parts = pl.pallas_call(
        kernel,
        out_shape=jax.ShapeDtypeStruct((B, 1, 128), jnp.float32),
        grid=(B,),
        in_specs=[
            pl.BlockSpec((1, 4, P), lambda b: (b, 0, 0)),
            pl.BlockSpec((1, C, P), lambda b: (b, 0, 0)),
            pl.BlockSpec((1, 4, P), lambda b: (b, 0, 0)),
            pl.BlockSpec((1, 1, P), lambda b: (b, 0, 0)),
        ],
        out_specs=pl.BlockSpec((1, 1, 128), lambda b: (b, 0, 0)),
        compiler_params=pltpu.CompilerParams(
            dimension_semantics=("parallel",)),
    )(loc_t, conf_t, loc_gt_t, labels)

    loss_loc = jnp.sum(parts[:, 0, 0])
    loss_conf = jnp.sum(parts[:, 0, 1])
    num_pos = jnp.sum(parts[:, 0, 2])
    # Note: like the PyTorch original, this is NaN when the batch has no
    # positive priors (division by zero) — semantics intentionally preserved.
    return (loss_loc + loss_conf) / num_pos


def _reference_loss(loc, conf, targets, *, neg_pos):
    """Pure-JAX reference mirroring the PyTorch code (for verification)."""
    loc_gt = targets[..., :4]
    labels = targets[..., 4].astype(jnp.int32)
    pos = labels > 0
    num_pos = pos.sum(axis=1)
    diff = loc - loc_gt
    ad = jnp.abs(diff)
    sl1 = jnp.where(ad < 1.0, 0.5 * diff * diff, ad - 0.5)
    loss_loc = jnp.sum(jnp.where(pos[..., None], sl1, 0.0))
    lse = jax.scipy.special.logsumexp(conf, axis=-1)
    conf_at_gt = jnp.take_along_axis(conf, labels[..., None], axis=-1)[..., 0]
    ce = lse - conf_at_gt
    mining = jnp.where(pos, 0.0, ce)
    loss_idx = jnp.argsort(-mining, axis=1)
    idx_rank = jnp.argsort(loss_idx, axis=1)
    P = conf.shape[1]
    num_neg = jnp.minimum(neg_pos * num_pos, P - 1)
    neg = idx_rank < num_neg[:, None]
    sel = jnp.logical_or(pos, neg)
    loss_conf = jnp.sum(jnp.where(sel, ce, 0.0))
    return (loss_loc + loss_conf) / num_pos.sum()


if __name__ == "__main__":
    B, P, C = 2, 128, 8          # batch, num_priors, num_classes (small test shapes)
    NEG_POS = 3

    key = jax.random.PRNGKey(0)
    k1, k2, k3, k4, k5 = jax.random.split(key, 5)
    loc = jax.random.normal(k1, (B, P, 4), jnp.float32)
    conf = jax.random.normal(k2, (B, P, C), jnp.float32)
    loc_gt = jax.random.normal(k3, (B, P, 4), jnp.float32)
    # labels: ~25% positive priors with classes in [1, C-1], rest background (0);
    # force at least one positive per image so num_pos > 0 (avoids the inherited
    # divide-by-zero hazard of the original module).
    is_pos = jax.random.uniform(k4, (B, P)) < 0.25
    is_pos = is_pos.at[:, 0].set(True)
    cls = jax.random.randint(k5, (B, P), 1, C)
    labels = jnp.where(is_pos, cls, 0).astype(jnp.float32)
    targets = jnp.concatenate([loc_gt, labels[..., None]], axis=-1)  # (B, P, 5)

    loss = multibox_loss(loc, conf, targets, num_classes=C, neg_pos=NEG_POS)
    loss = jax.block_until_ready(loss)

    ref = _reference_loss(loc, conf, targets, neg_pos=NEG_POS)
    assert jnp.allclose(loss, ref, rtol=1e-5, atol=1e-5), (float(loss), float(ref))

    print("KERNEL_OK")
</pallas_src>

<mosaic_0001>
module attributes {stable_mosaic.version = 11 : i64} {
  func.func @_multibox_loss_kernel(%arg0: i32, %arg1: memref<1x4x128xf32, #tpu.memory_space<vmem>>, %arg2: memref<1x8x128xf32, #tpu.memory_space<vmem>>, %arg3: memref<1x4x128xf32, #tpu.memory_space<vmem>>, %arg4: memref<1x1x128xi32, #tpu.memory_space<vmem>>, %arg5: memref<1x1x128xf32, #tpu.memory_space<vmem>>) attributes {dimension_semantics = [#tpu.dimension_semantics<parallel>], iteration_bounds = array<i64: 2>, scalar_prefetch = 0 : i64, scratch_operands = 0 : i64, tpu.core_type = #tpu.core_type<tc>, window_params = [{transform_indices = @transform_0, window_bounds = array<i64: 1, 4, 128>}, {transform_indices = @transform_1, window_bounds = array<i64: 1, 8, 128>}, {transform_indices = @transform_2, window_bounds = array<i64: 1, 4, 128>}, {transform_indices = @transform_3, window_bounds = array<i64: 1, 1, 128>}, {transform_indices = @transform_4, window_bounds = array<i64: 1, 1, 128>}]} {
    %c0 = arith.constant 0 : index
    %c0_0 = arith.constant 0 : index
    %c0_1 = arith.constant 0 : index
    %0 = vector.load %arg1[%c0, %c0_0, %c0_1] : memref<1x4x128xf32, #tpu.memory_space<vmem>>, vector<1x4x128xf32>
    %1 = vector.shape_cast %0 : vector<1x4x128xf32> to vector<4x128xf32>
    %c0_2 = arith.constant 0 : index
    %c0_3 = arith.constant 0 : index
    %c0_4 = arith.constant 0 : index
    %2 = vector.load %arg2[%c0_2, %c0_3, %c0_4] : memref<1x8x128xf32, #tpu.memory_space<vmem>>, vector<1x8x128xf32>
    %3 = vector.shape_cast %2 : vector<1x8x128xf32> to vector<8x128xf32>
    %c0_5 = arith.constant 0 : index
    %c0_6 = arith.constant 0 : index
    %c0_7 = arith.constant 0 : index
    %4 = vector.load %arg3[%c0_5, %c0_6, %c0_7] : memref<1x4x128xf32, #tpu.memory_space<vmem>>, vector<1x4x128xf32>
    %5 = vector.shape_cast %4 : vector<1x4x128xf32> to vector<4x128xf32>
    %c0_8 = arith.constant 0 : index
    %c0_9 = arith.constant 0 : index
    %c0_10 = arith.constant 0 : index
    %6 = vector.load %arg4[%c0_8, %c0_9, %c0_10] : memref<1x1x128xi32, #tpu.memory_space<vmem>>, vector<1x1x128xi32>
    %7 = vector.shape_cast %6 : vector<1x1x128xi32> to vector<1x128xi32>
    %c0_i32 = arith.constant 0 : i32
    %8 = vector.broadcast %c0_i32 : i32 to vector<1x128xi32>
    %9 = arith.cmpi sgt, %7, %8 : vector<1x128xi32>
    %10 = arith.extui %9 : vector<1x128xi1> to vector<1x128xi32>
    %11 = arith.sitofp %10 : vector<1x128xi32> to vector<1x128xf32>
    %12 = arith.extui %9 : vector<1x128xi1> to vector<1x128xi32>
    %13 = vector.shape_cast %12 : vector<1x128xi32> to vector<1x1x128xi32>
    %cst = arith.constant dense<0> : vector<1xi32>
    %14 = vector.multi_reduction <add>, %13, %cst [1, 2] : vector<1x1x128xi32> to vector<1xi32>
    %15 = vector.shape_cast %14 : vector<1xi32> to vector<1x1x1xi32>
    %16 = vector.extract %15[0, 0, 0] : i32 from vector<1x1x1xi32>
    %17 = arith.sitofp %16 : i32 to f32
    %18 = arith.subf %1, %5 : vector<4x128xf32>
    %19 = math.absf %18 : vector<4x128xf32>
    %cst_11 = arith.constant 1.000000e+00 : f32
    %20 = vector.broadcast %cst_11 : f32 to vector<4x128xf32>
    %21 = arith.cmpf olt, %19, %20 : vector<4x128xf32>
    %cst_12 = arith.constant 5.000000e-01 : f32
    %22 = vector.broadcast %cst_12 : f32 to vector<4x128xf32>
    %23 = arith.mulf %22, %18 : vector<4x128xf32>
    %24 = arith.mulf %23, %18 : vector<4x128xf32>
    %cst_13 = arith.constant 5.000000e-01 : f32
    %25 = vector.broadcast %cst_13 : f32 to vector<4x128xf32>
    %26 = arith.subf %19, %25 : vector<4x128xf32>
    %27 = arith.select %21, %24, %26 : vector<4x128xi1>, vector<4x128xf32>
    %28 = vector.broadcast %11 : vector<1x128xf32> to vector<4x128xf32>
    %29 = arith.mulf %27, %28 : vector<4x128xf32>
    %30 = vector.shape_cast %29 : vector<4x128xf32> to vector<1x4x128xf32>
    %cst_14 = arith.constant dense<0.000000e+00> : vector<1xf32>
    %31 = vector.multi_reduction <add>, %30, %cst_14 [1, 2] : vector<1x4x128xf32> to vector<1xf32>
    %32 = vector.shape_cast %31 : vector<1xf32> to vector<1x1x1xf32>
    %33 = vector.extract %32[0, 0, 0] : f32 from vector<1x1x1xf32>
    %cst_15 = arith.constant dense<0xFF800000> : vector<128xf32>
    %34 = vector.multi_reduction <maximumf>, %3, %cst_15 [0] : vector<8x128xf32> to vector<128xf32>
    %35 = vector.shape_cast %34 : vector<128xf32> to vector<1x128xf32>
    %36 = vector.broadcast %35 : vector<1x128xf32> to vector<8x128xf32>
    %37 = arith.subf %3, %36 : vector<8x128xf32>
    %38 = math.exp %37 : vector<8x128xf32>
    %cst_16 = arith.constant dense<0.000000e+00> : vector<128xf32>
    %39 = vector.multi_reduction <add>, %38, %cst_16 [0] : vector<8x128xf32> to vector<128xf32>
    %40 = vector.shape_cast %39 : vector<128xf32> to vector<1x128xf32>
    %41 = math.log %40 : vector<1x128xf32>
    %42 = arith.addf %41, %35 : vector<1x128xf32>
    %43 = tpu.iota {dimensions = array<i32: 0>} : vector<8x128xi32>
    %44 = vector.broadcast %7 : vector<1x128xi32> to vector<8x128xi32>
    %45 = arith.cmpi eq, %44, %43 : vector<8x128xi32>
    %cst_17 = arith.constant 0.000000e+00 : f32
    %46 = vector.broadcast %cst_17 : f32 to vector<8x128xf32>
    %47 = arith.select %45, %3, %46 : vector<8x128xi1>, vector<8x128xf32>
    %cst_18 = arith.constant dense<0.000000e+00> : vector<128xf32>
    %48 = vector.multi_reduction <add>, %47, %cst_18 [0] : vector<8x128xf32> to vector<128xf32>
    %49 = vector.shape_cast %48 : vector<128xf32> to vector<1x128xf32>
    %50 = arith.subf %42, %49 : vector<1x128xf32>
    %cst_19 = arith.constant 0.000000e+00 : f32
    %51 = vector.broadcast %cst_19 : f32 to vector<1x128xf32>
    %52 = arith.select %9, %51, %50 : vector<1x128xi1>, vector<1x128xf32>
    %cst_20 = arith.constant 0.000000e+00 : f32
    %53 = vector.broadcast %cst_20 : f32 to vector<1x128xf32>
    %54 = arith.maximumf %52, %53 : vector<1x128xf32>
    %55 = tpu.bitcast %54 : vector<1x128xf32> -> vector<1x128xi32>
    %c3_i32 = arith.constant 3 : i32
    %56 = arith.muli %c3_i32, %16 : i32
    %c127_i32 = arith.constant 127 : i32
    %57 = arith.minsi %56, %c127_i32 : i32
    %c0_i32_21 = arith.constant 0 : i32
    %c1073741824_i32 = arith.constant 1073741824 : i32
    %58 = arith.ori %c0_i32_21, %c1073741824_i32 : i32
    %c0_i32_22 = arith.constant 0 : i32
    %c536870912_i32 = arith.constant 536870912 : i32
    %59 = arith.ori %c0_i32_22, %c536870912_i32 : i32
    %c536870912_i32_23 = arith.constant 536870912 : i32
    %60 = arith.ori %58, %c536870912_i32_23 : i32
    %61 = vector.broadcast %60 : i32 to vector<1x128xi32>
    %62 = arith.cmpi sge, %55, %61 : vector<1x128xi32>
    %63 = arith.extui %62 : vector<1x128xi1> to vector<1x128xi32>
    %64 = vector.shape_cast %63 : vector<1x128xi32> to vector<1x1x128xi32>
    %cst_24 = arith.constant dense<0> : vector<1xi32>
    %65 = vector.multi_reduction <add>, %64, %cst_24 [1, 2] : vector<1x1x128xi32> to vector<1xi32>
    %66 = vector.shape_cast %65 : vector<1xi32> to vector<1x1x1xi32>
    %67 = vector.extract %66[0, 0, 0] : i32 from vector<1x1x1xi32>
    %68 = vector.broadcast %58 : i32 to vector<1x128xi32>
    %69 = arith.cmpi sge, %55, %68 : vector<1x128xi32>
    %70 = arith.extui %69 : vector<1x128xi1> to vector<1x128xi32>
    %71 = vector.shape_cast %70 : vector<1x128xi32> to vector<1x1x128xi32>
    %cst_25 = arith.constant dense<0> : vector<1xi32>
    %72 = vector.multi_reduction <add>, %71, %cst_25 [1, 2] : vector<1x1x128xi32> to vector<1xi32>
    %73 = vector.shape_cast %72 : vector<1xi32> to vector<1x1x1xi32>
    %74 = vector.extract %73[0, 0, 0] : i32 from vector<1x1x1xi32>
    %75 = vector.broadcast %59 : i32 to vector<1x128xi32>
    %76 = arith.cmpi sge, %55, %75 : vector<1x128xi32>
    %77 = arith.extui %76 : vector<1x128xi1> to vector<1x128xi32>
    %78 = vector.shape_cast %77 : vector<1x128xi32> to vector<1x1x128xi32>
    %cst_26 = arith.constant dense<0> : vector<1xi32>
    %79 = vector.multi_reduction <add>, %78, %cst_26 [1, 2] : vector<1x1x128xi32> to vector<1xi32>
    %80 = vector.shape_cast %79 : vector<1xi32> to vector<1x1x1xi32>
    %81 = vector.extract %80[0, 0, 0] : i32 from vector<1x1x1xi32>
    %82 = arith.cmpi sge, %67, %57 : i32
    %83 = arith.cmpi sge, %74, %57 : i32
    %84 = arith.cmpi sge, %81, %57 : i32
    %c0_i32_27 = arith.constant 0 : i32
    %85 = arith.select %84, %59, %c0_i32_27 : i32
    %86 = arith.select %83, %58, %85 : i32
    %87 = arith.select %82, %60, %86 : i32
    %c268435456_i32 = arith.constant 268435456 : i32
    %88 = arith.ori %87, %c268435456_i32 : i32
    %c134217728_i32 = arith.constant 134217728 : i32
    %89 = arith.ori %87, %c134217728_i32 : i32
    %c134217728_i32_28 = arith.constant 134217728 : i32
    %90 = arith.ori %88, %c134217728_i32_28 : i32
    %91 = vector.broadcast %90 : i32 to vector<1x128xi32>
    %92 = arith.cmpi sge, %55, %91 : vector<1x128xi32>
    %93 = arith.extui %92 : vector<1x128xi1> to vector<1x128xi32>
    %94 = vector.shape_cast %93 : vector<1x128xi32> to vector<1x1x128xi32>
    %cst_29 = arith.constant dense<0> : vector<1xi32>
    %95 = vector.multi_reduction <add>, %94, %cst_29 [1, 2] : vector<1x1x128xi32> to vector<1xi32>
    %96 = vector.shape_cast %95 : vector<1xi32> to vector<1x1x1xi32>
    %97 = vector.extract %96[0, 0, 0] : i32 from vector<1x1x1xi32>
    %98 = vector.broadcast %88 : i32 to vector<1x128xi32>
    %99 = arith.cmpi sge, %55, %98 : vector<1x128xi32>
    %100 = arith.extui %99 : vector<1x128xi1> to vector<1x128xi32>
    %101 = vector.shape_cast %100 : vector<1x128xi32> to vector<1x1x128xi32>
    %cst_30 = arith.constant dense<0> : vector<1xi32>
    %102 = vector.multi_reduction <add>, %101, %cst_30 [1, 2] : vector<1x1x128xi32> to vector<1xi32>
    %103 = vector.shape_cast %102 : vector<1xi32> to vector<1x1x1xi32>
    %104 = vector.extract %103[0, 0, 0] : i32 from vector<1x1x1xi32>
    %105 = vector.broadcast %89 : i32 to vector<1x128xi32>
    %106 = arith.cmpi sge, %55, %105 : vector<1x128xi32>
    %107 = arith.extui %106 : vector<1x128xi1> to vector<1x128xi32>
    %108 = vector.shape_cast %107 : vector<1x128xi32> to vector<1x1x128xi32>
    %cst_31 = arith.constant dense<0> : vector<1xi32>
    %109 = vector.multi_reduction <add>, %108, %cst_31 [1, 2] : vector<1x1x128xi32> to vector<1xi32>
    %110 = vector.shape_cast %109 : vector<1xi32> to vector<1x1x1xi32>
    %111 = vector.extract %110[0, 0, 0] : i32 from vector<1x1x1xi32>
    %112 = arith.cmpi sge, %97, %57 : i32
    %113 = arith.cmpi sge, %104, %57 : i32
    %114 = arith.cmpi sge, %111, %57 : i32
    %115 = arith.select %114, %89, %87 : i32
    %116 = arith.select %113, %88, %115 : i32
    %117 = arith.select %112, %90, %116 : i32
    %c67108864_i32 = arith.constant 67108864 : i32
    %118 = arith.ori %117, %c67108864_i32 : i32
    %c33554432_i32 = arith.constant 33554432 : i32
    %119 = arith.ori %117, %c33554432_i32 : i32
    %c33554432_i32_32 = arith.constant 33554432 : i32
    %120 = arith.ori %118, %c33554432_i32_32 : i32
    %121 = vector.broadcast %120 : i32 to vector<1x128xi32>
    %122 = arith.cmpi sge, %55, %121 : vector<1x128xi32>
    %123 = arith.extui %122 : vector<1x128xi1> to vector<1x128xi32>
    %124 = vector.shape_cast %123 : vector<1x128xi32> to vector<1x1x128xi32>
    %cst_33 = arith.constant dense<0> : vector<1xi32>
    %125 = vector.multi_reduction <add>, %124, %cst_33 [1, 2] : vector<1x1x128xi32> to vector<1xi32>
    %126 = vector.shape_cast %125 : vector<1xi32> to vector<1x1x1xi32>
    %127 = vector.extract %126[0, 0, 0] : i32 from vector<1x1x1xi32>
    %128 = vector.broadcast %118 : i32 to vector<1x128xi32>
    %129 = arith.cmpi sge, %55, %128 : vector<1x128xi32>
    %130 = arith.extui %129 : vector<1x128xi1> to vector<1x128xi32>
    %131 = vector.shape_cast %130 : vector<1x128xi32> to vector<1x1x128xi32>
    %cst_34 = arith.constant dense<0> : vector<1xi32>
    %132 = vector.multi_reduction <add>, %131, %cst_34 [1, 2] : vector<1x1x128xi32> to vector<1xi32>
    %133 = vector.shape_cast %132 : vector<1xi32> to vector<1x1x1xi32>
    %134 = vector.extract %133[0, 0, 0] : i32 from vector<1x1x1xi32>
    %135 = vector.broadcast %119 : i32 to vector<1x128xi32>
    %136 = arith.cmpi sge, %55, %135 : vector<1x128xi32>
    %137 = arith.extui %136 : vector<1x128xi1> to vector<1x128xi32>
    %138 = vector.shape_cast %137 : vector<1x128xi32> to vector<1x1x128xi32>
    %cst_35 = arith.constant dense<0> : vector<1xi32>
    %139 = vector.multi_reduction <add>, %138, %cst_35 [1, 2] : vector<1x1x128xi32> to vector<1xi32>
    %140 = vector.shape_cast %139 : vector<1xi32> to vector<1x1x1xi32>
    %141 = vector.extract %140[0, 0, 0] : i32 from vector<1x1x1xi32>
    %142 = arith.cmpi sge, %127, %57 : i32
    %143 = arith.cmpi sge, %134, %57 : i32
    %144 = arith.cmpi sge, %141, %57 : i32
    %145 = arith.select %144, %119, %117 : i32
    %146 = arith.select %143, %118, %145 : i32
    %147 = arith.select %142, %120, %146 : i32
    %c16777216_i32 = arith.constant 16777216 : i32
    %148 = arith.ori %147, %c16777216_i32 : i32
    %c8388608_i32 = arith.constant 8388608 : i32
    %149 = arith.ori %147, %c8388608_i32 : i32
    %c8388608_i32_36 = arith.constant 8388608 : i32
    %150 = arith.ori %148, %c8388608_i32_36 : i32
    %151 = vector.broadcast %150 : i32 to vector<1x128xi32>
    %152 = arith.cmpi sge, %55, %151 : vector<1x128xi32>
    %153 = arith.extui %152 : vector<1x128xi1> to vector<1x128xi32>
    %154 = vector.shape_cast %153 : vector<1x128xi32> to vector<1x1x128xi32>
    %cst_37 = arith.constant dense<0> : vector<1xi32>
    %155 = vector.multi_reduction <add>, %154, %cst_37 [1, 2] : vector<1x1x128xi32> to vector<1xi32>
    %156 = vector.shape_cast %155 : vector<1xi32> to vector<1x1x1xi32>
    %157 = vector.extract %156[0, 0, 0] : i32 from vector<1x1x1xi32>
    %158 = vector.broadcast %148 : i32 to vector<1x128xi32>
    %159 = arith.cmpi sge, %55, %158 : vector<1x128xi32>
    %160 = arith.extui %159 : vector<1x128xi1> to vector<1x128xi32>
    %161 = vector.shape_cast %160 : vector<1x128xi32> to vector<1x1x128xi32>
    %cst_38 = arith.constant dense<0> : vector<1xi32>
    %162 = vector.multi_reduction <add>, %161, %cst_38 [1, 2] : vector<1x1x128xi32> to vector<1xi32>
    %163 = vector.shape_cast %162 : vector<1xi32> to vector<1x1x1xi32>
    %164 = vector.extract %163[0, 0, 0] : i32 from vector<1x1x1xi32>
    %165 = vector.broadcast %149 : i32 to vector<1x128xi32>
    %166 = arith.cmpi sge, %55, %165 : vector<1x128xi32>
    %167 = arith.extui %166 : vector<1x128xi1> to vector<1x128xi32>
    %168 = vector.shape_cast %167 : vector<1x128xi32> to vector<1x1x128xi32>
    %cst_39 = arith.constant dense<0> : vector<1xi32>
    %169 = vector.multi_reduction <add>, %168, %cst_39 [1, 2] : vector<1x1x128xi32> to vector<1xi32>
    %170 = vector.shape_cast %169 : vector<1xi32> to vector<1x1x1xi32>
    %171 = vector.extract %170[0, 0, 0] : i32 from vector<1x1x1xi32>
    %172 = arith.cmpi sge, %157, %57 : i32
    %173 = arith.cmpi sge, %164, %57 : i32
    %174 = arith.cmpi sge, %171, %57 : i32
    %175 = arith.select %174, %149, %147 : i32
    %176 = arith.select %173, %148, %175 : i32
    %177 = arith.select %172, %150, %176 : i32
    %c4194304_i32 = arith.constant 4194304 : i32
    %178 = arith.ori %177, %c4194304_i32 : i32
    %c2097152_i32 = arith.constant 2097152 : i32
    %179 = arith.ori %177, %c2097152_i32 : i32
    %c2097152_i32_40 = arith.constant 2097152 : i32
    %180 = arith.ori %178, %c2097152_i32_40 : i32
    %181 = vector.broadcast %180 : i32 to vector<1x128xi32>
    %182 = arith.cmpi sge, %55, %181 : vector<1x128xi32>
    %183 = arith.extui %182 : vector<1x128xi1> to vector<1x128xi32>
    %184 = vector.shape_cast %183 : vector<1x128xi32> to vector<1x1x128xi32>
    %cst_41 = arith.constant dense<0> : vector<1xi32>
    %185 = vector.multi_reduction <add>, %184, %cst_41 [1, 2] : vector<1x1x128xi32> to vector<1xi32>
    %186 = vector.shape_cast %185 : vector<1xi32> to vector<1x1x1xi32>
    %187 = vector.extract %186[0, 0, 0] : i32 from vector<1x1x1xi32>
    %188 = vector.broadcast %178 : i32 to vector<1x128xi32>
    %189 = arith.cmpi sge, %55, %188 : vector<1x128xi32>
    %190 = arith.extui %189 : vector<1x128xi1> to vector<1x128xi32>
    %191 = vector.shape_cast %190 : vector<1x128xi32> to vector<1x1x128xi32>
    %cst_42 = arith.constant dense<0> : vector<1xi32>
    %192 = vector.multi_reduction <add>, %191, %cst_42 [1, 2] : vector<1x1x128xi32> to vector<1xi32>
    %193 = vector.shape_cast %192 : vector<1xi32> to vector<1x1x1xi32>
    %194 = vector.extract %193[0, 0, 0] : i32 from vector<1x1x1xi32>
    %195 = vector.broadcast %179 : i32 to vector<1x128xi32>
    %196 = arith.cmpi sge, %55, %195 : vector<1x128xi32>
    %197 = arith.extui %196 : vector<1x128xi1> to vector<1x128xi32>
    %198 = vector.shape_cast %197 : vector<1x128xi32> to vector<1x1x128xi32>
    %cst_43 = arith.constant dense<0> : vector<1xi32>
    %199 = vector.multi_reduction <add>, %198, %cst_43 [1, 2] : vector<1x1x128xi32> to vector<1xi32>
    %200 = vector.shape_cast %199 : vector<1xi32> to vector<1x1x1xi32>
    %201 = vector.extract %200[0, 0, 0] : i32 from vector<1x1x1xi32>
    %202 = arith.cmpi sge, %187, %57 : i32
    %203 = arith.cmpi sge, %194, %57 : i32
    %204 = arith.cmpi sge, %201, %57 : i32
    %205 = arith.select %204, %179, %177 : i32
    %206 = arith.select %203, %178, %205 : i32
    %207 = arith.select %202, %180, %206 : i32
    %c1048576_i32 = arith.constant 1048576 : i32
    %208 = arith.ori %207, %c1048576_i32 : i32
    %c524288_i32 = arith.constant 524288 : i32
    %209 = arith.ori %207, %c524288_i32 : i32
    %c524288_i32_44 = arith.constant 524288 : i32
    %210 = arith.ori %208, %c524288_i32_44 : i32
    %211 = vector.broadcast %210 : i32 to vector<1x128xi32>
    %212 = arith.cmpi sge, %55, %211 : vector<1x128xi32>
    %213 = arith.extui %212 : vector<1x128xi1> to vector<1x128xi32>
    %214 = vector.shape_cast %213 : vector<1x128xi32> to vector<1x1x128xi32>
    %cst_45 = arith.constant dense<0> : vector<1xi32>
    %215 = vector.multi_reduction <add>, %214, %cst_45 [1, 2] : vector<1x1x128xi32> to vector<1xi32>
    %216 = vector.shape_cast %215 : vector<1xi32> to vector<1x1x1xi32>
    %217 = vector.extract %216[0, 0, 0] : i32 from vector<1x1x1xi32>
    %218 = vector.broadcast %208 : i32 to vector<1x128xi32>
    %219 = arith.cmpi sge, %55, %218 : vector<1x128xi32>
    %220 = arith.extui %219 : vector<1x128xi1> to vector<1x128xi32>
    %221 = vector.shape_cast %220 : vector<1x128xi32> to vector<1x1x128xi32>
    %cst_46 = arith.constant dense<0> : vector<1xi32>
    %222 = vector.multi_reduction <add>, %221, %cst_46 [1, 2] : vector<1x1x128xi32> to vector<1xi32>
    %223 = vector.shape_cast %222 : vector<1xi32> to vector<1x1x1xi32>
    %224 = vector.extract %223[0, 0, 0] : i32 from vector<1x1x1xi32>
    %225 = vector.broadcast %209 : i32 to vector<1x128xi32>
    %226 = arith.cmpi sge, %55, %225 : vector<1x128xi32>
    %227 = arith.extui %226 : vector<1x128xi1> to vector<1x128xi32>
    %228 = vector.shape_cast %227 : vector<1x128xi32> to vector<1x1x128xi32>
    %cst_47 = arith.constant dense<0> : vector<1xi32>
    %229 = vector.multi_reduction <add>, %228, %cst_47 [1, 2] : vector<1x1x128xi32> to vector<1xi32>
    %230 = vector.shape_cast %229 : vector<1xi32> to vector<1x1x1xi32>
    %231 = vector.extract %230[0, 0, 0] : i32 from vector<1x1x1xi32>
    %232 = arith.cmpi sge, %217, %57 : i32
    %233 = arith.cmpi sge, %224, %57 : i32
    %234 = arith.cmpi sge, %231, %57 : i32
    %235 = arith.select %234, %209, %207 : i32
    %236 = arith.select %233, %208, %235 : i32
    %237 = arith.select %232, %210, %236 : i32
    %c262144_i32 = arith.constant 262144 : i32
    %238 = arith.ori %237, %c262144_i32 : i32
    %c131072_i32 = arith.constant 131072 : i32
    %239 = arith.ori %237, %c131072_i32 : i32
    %c131072_i32_48 = arith.constant 131072 : i32
    %240 = arith.ori %238, %c131072_i32_48 : i32
    %241 = vector.broadcast %240 : i32 to vector<1x128xi32>
    %242 = arith.cmpi sge, %55, %241 : vector<1x128xi32>
    %243 = arith.extui %242 : vector<1x128xi1> to vector<1x128xi32>
    %244 = vector.shape_cast %243 : vector<1x128xi32> to vector<1x1x128xi32>
    %cst_49 = arith.constant dense<0> : vector<1xi32>
    %245 = vector.multi_reduction <add>, %244, %cst_49 [1, 2] : vector<1x1x128xi32> to vector<1xi32>
    %246 = vector.shape_cast %245 : vector<1xi32> to vector<1x1x1xi32>
    %247 = vector.extract %246[0, 0, 0] : i32 from vector<1x1x1xi32>
    %248 = vector.broadcast %238 : i32 to vector<1x128xi32>
    %249 = arith.cmpi sge, %55, %248 : vector<1x128xi32>
    %250 = arith.extui %249 : vector<1x128xi1> to vector<1x128xi32>
    %251 = vector.shape_cast %250 : vector<1x128xi32> to vector<1x1x128xi32>
    %cst_50 = arith.constant dense<0> : vector<1xi32>
    %252 = vector.multi_reduction <add>, %251, %cst_50 [1, 2] : vector<1x1x128xi32> to vector<1xi32>
    %253 = vector.shape_cast %252 : vector<1xi32> to vector<1x1x1xi32>
    %254 = vector.extract %253[0, 0, 0] : i32 from vector<1x1x1xi32>
    %255 = vector.broadcast %239 : i32 to vector<1x128xi32>
    %256 = arith.cmpi sge, %55, %255 : vector<1x128xi32>
    %257 = arith.extui %256 : vector<1x128xi1> to vector<1x128xi32>
    %258 = vector.shape_cast %257 : vector<1x128xi32> to vector<1x1x128xi32>
    %cst_51 = arith.constant dense<0> : vector<1xi32>
    %259 = vector.multi_reduction <add>, %258, %cst_51 [1, 2] : vector<1x1x128xi32> to vector<1xi32>
    %260 = vector.shape_cast %259 : vector<1xi32> to vector<1x1x1xi32>
    %261 = vector.extract %260[0, 0, 0] : i32 from vector<1x1x1xi32>
    %262 = arith.cmpi sge, %247, %57 : i32
    %263 = arith.cmpi sge, %254, %57 : i32
    %264 = arith.cmpi sge, %261, %57 : i32
    %265 = arith.select %264, %239, %237 : i32
    %266 = arith.select %263, %238, %265 : i32
    %267 = arith.select %262, %240, %266 : i32
    %c65536_i32 = arith.constant 65536 : i32
    %268 = arith.ori %267, %c65536_i32 : i32
    %c32768_i32 = arith.constant 32768 : i32
    %269 = arith.ori %267, %c32768_i32 : i32
    %c32768_i32_52 = arith.constant 32768 : i32
    %270 = arith.ori %268, %c32768_i32_52 : i32
    %271 = vector.broadcast %270 : i32 to vector<1x128xi32>
    %272 = arith.cmpi sge, %55, %271 : vector<1x128xi32>
    %273 = arith.extui %272 : vector<1x128xi1> to vector<1x128xi32>
    %274 = vector.shape_cast %273 : vector<1x128xi32> to vector<1x1x128xi32>
    %cst_53 = arith.constant dense<0> : vector<1xi32>
    %275 = vector.multi_reduction <add>, %274, %cst_53 [1, 2] : vector<1x1x128xi32> to vector<1xi32>
    %276 = vector.shape_cast %275 : vector<1xi32> to vector<1x1x1xi32>
    %277 = vector.extract %276[0, 0, 0] : i32 from vector<1x1x1xi32>
    %278 = vector.broadcast %268 : i32 to vector<1x128xi32>
    %279 = arith.cmpi sge, %55, %278 : vector<1x128xi32>
    %280 = arith.extui %279 : vector<1x128xi1> to vector<1x128xi32>
    %281 = vector.shape_cast %280 : vector<1x128xi32> to vector<1x1x128xi32>
    %cst_54 = arith.constant dense<0> : vector<1xi32>
    %282 = vector.multi_reduction <add>, %281, %cst_54 [1, 2] : vector<1x1x128xi32> to vector<1xi32>
    %283 = vector.shape_cast %282 : vector<1xi32> to vector<1x1x1xi32>
    %284 = vector.extract %283[0, 0, 0] : i32 from vector<1x1x1xi32>
    %285 = vector.broadcast %269 : i32 to vector<1x128xi32>
    %286 = arith.cmpi sge, %55, %285 : vector<1x128xi32>
    %287 = arith.extui %286 : vector<1x128xi1> to vector<1x128xi32>
    %288 = vector.shape_cast %287 : vector<1x128xi32> to vector<1x1x128xi32>
    %cst_55 = arith.constant dense<0> : vector<1xi32>
    %289 = vector.multi_reduction <add>, %288, %cst_55 [1, 2] : vector<1x1x128xi32> to vector<1xi32>
    %290 = vector.shape_cast %289 : vector<1xi32> to vector<1x1x1xi32>
    %291 = vector.extract %290[0, 0, 0] : i32 from vector<1x1x1xi32>
    %292 = arith.cmpi sge, %277, %57 : i32
    %293 = arith.cmpi sge, %284, %57 : i32
    %294 = arith.cmpi sge, %291, %57 : i32
    %295 = arith.select %294, %269, %267 : i32
    %296 = arith.select %293, %268, %295 : i32
    %297 = arith.select %292, %270, %296 : i32
    %c16384_i32 = arith.constant 16384 : i32
    %298 = arith.ori %297, %c16384_i32 : i32
    %c8192_i32 = arith.constant 8192 : i32
    %299 = arith.ori %297, %c8192_i32 : i32
    %c8192_i32_56 = arith.constant 8192 : i32
    %300 = arith.ori %298, %c8192_i32_56 : i32
    %301 = vector.broadcast %300 : i32 to vector<1x128xi32>
    %302 = arith.cmpi sge, %55, %301 : vector<1x128xi32>
    %303 = arith.extui %302 : vector<1x128xi1> to vector<1x128xi32>
    %304 = vector.shape_cast %303 : vector<1x128xi32> to vector<1x1x128xi32>
    %cst_57 = arith.constant dense<0> : vector<1xi32>
    %305 = vector.multi_reduction <add>, %304, %cst_57 [1, 2] : vector<1x1x128xi32> to vector<1xi32>
    %306 = vector.shape_cast %305 : vector<1xi32> to vector<1x1x1xi32>
    %307 = vector.extract %306[0, 0, 0] : i32 from vector<1x1x1xi32>
    %308 = vector.broadcast %298 : i32 to vector<1x128xi32>
    %309 = arith.cmpi sge, %55, %308 : vector<1x128xi32>
    %310 = arith.extui %309 : vector<1x128xi1> to vector<1x128xi32>
    %311 = vector.shape_cast %310 : vector<1x128xi32> to vector<1x1x128xi32>
    %cst_58 = arith.constant dense<0> : vector<1xi32>
    %312 = vector.multi_reduction <add>, %311, %cst_58 [1, 2] : vector<1x1x128xi32> to vector<1xi32>
    %313 = vector.shape_cast %312 : vector<1xi32> to vector<1x1x1xi32>
    %314 = vector.extract %313[0, 0, 0] : i32 from vector<1x1x1xi32>
    %315 = vector.broadcast %299 : i32 to vector<1x128xi32>
    %316 = arith.cmpi sge, %55, %315 : vector<1x128xi32>
    %317 = arith.extui %316 : vector<1x128xi1> to vector<1x128xi32>
    %318 = vector.shape_cast %317 : vector<1x128xi32> to vector<1x1x128xi32>
    %cst_59 = arith.constant dense<0> : vector<1xi32>
    %319 = vector.multi_reduction <add>, %318, %cst_59 [1, 2] : vector<1x1x128xi32> to vector<1xi32>
    %320 = vector.shape_cast %319 : vector<1xi32> to vector<1x1x1xi32>
    %321 = vector.extract %320[0, 0, 0] : i32 from vector<1x1x1xi32>
    %322 = arith.cmpi sge, %307, %57 : i32
    %323 = arith.cmpi sge, %314, %57 : i32
    %324 = arith.cmpi sge, %321, %57 : i32
    %325 = arith.select %324, %299, %297 : i32
    %326 = arith.select %323, %298, %325 : i32
    %327 = arith.select %322, %300, %326 : i32
    %c4096_i32 = arith.constant 4096 : i32
    %328 = arith.ori %327, %c4096_i32 : i32
    %c2048_i32 = arith.constant 2048 : i32
    %329 = arith.ori %327, %c2048_i32 : i32
    %c2048_i32_60 = arith.constant 2048 : i32
    %330 = arith.ori %328, %c2048_i32_60 : i32
    %331 = vector.broadcast %330 : i32 to vector<1x128xi32>
    %332 = arith.cmpi sge, %55, %331 : vector<1x128xi32>
    %333 = arith.extui %332 : vector<1x128xi1> to vector<1x128xi32>
    %334 = vector.shape_cast %333 : vector<1x128xi32> to vector<1x1x128xi32>
    %cst_61 = arith.constant dense<0> : vector<1xi32>
    %335 = vector.multi_reduction <add>, %334, %cst_61 [1, 2] : vector<1x1x128xi32> to vector<1xi32>
    %336 = vector.shape_cast %335 : vector<1xi32> to vector<1x1x1xi32>
    %337 = vector.extract %336[0, 0, 0] : i32 from vector<1x1x1xi32>
    %338 = vector.broadcast %328 : i32 to vector<1x128xi32>
    %339 = arith.cmpi sge, %55, %338 : vector<1x128xi32>
    %340 = arith.extui %339 : vector<1x128xi1> to vector<1x128xi32>
    %341 = vector.shape_cast %340 : vector<1x128xi32> to vector<1x1x128xi32>
    %cst_62 = arith.constant dense<0> : vector<1xi32>
    %342 = vector.multi_reduction <add>, %341, %cst_62 [1, 2] : vector<1x1x128xi32> to vector<1xi32>
    %343 = vector.shape_cast %342 : vector<1xi32> to vector<1x1x1xi32>
    %344 = vector.extract %343[0, 0, 0] : i32 from vector<1x1x1xi32>
    %345 = vector.broadcast %329 : i32 to vector<1x128xi32>
    %346 = arith.cmpi sge, %55, %345 : vector<1x128xi32>
    %347 = arith.extui %346 : vector<1x128xi1> to vector<1x128xi32>
    %348 = vector.shape_cast %347 : vector<1x128xi32> to vector<1x1x128xi32>
    %cst_63 = arith.constant dense<0> : vector<1xi32>
    %349 = vector.multi_reduction <add>, %348, %cst_63 [1, 2] : vector<1x1x128xi32> to vector<1xi32>
    %350 = vector.shape_cast %349 : vector<1xi32> to vector<1x1x1xi32>
    %351 = vector.extract %350[0, 0, 0] : i32 from vector<1x1x1xi32>
    %352 = arith.cmpi sge, %337, %57 : i32
    %353 = arith.cmpi sge, %344, %57 : i32
    %354 = arith.cmpi sge, %351, %57 : i32
    %355 = arith.select %354, %329, %327 : i32
    %356 = arith.select %353, %328, %355 : i32
    %357 = arith.select %352, %330, %356 : i32
    %c1024_i32 = arith.constant 1024 : i32
    %358 = arith.ori %357, %c1024_i32 : i32
    %c512_i32 = arith.constant 512 : i32
    %359 = arith.ori %357, %c512_i32 : i32
    %c512_i32_64 = arith.constant 512 : i32
    %360 = arith.ori %358, %c512_i32_64 : i32
    %361 = vector.broadcast %360 : i32 to vector<1x128xi32>
    %362 = arith.cmpi sge, %55, %361 : vector<1x128xi32>
    %363 = arith.extui %362 : vector<1x128xi1> to vector<1x128xi32>
    %364 = vector.shape_cast %363 : vector<1x128xi32> to vector<1x1x128xi32>
    %cst_65 = arith.constant dense<0> : vector<1xi32>
    %365 = vector.multi_reduction <add>, %364, %cst_65 [1, 2] : vector<1x1x128xi32> to vector<1xi32>
    %366 = vector.shape_cast %365 : vector<1xi32> to vector<1x1x1xi32>
    %367 = vector.extract %366[0, 0, 0] : i32 from vector<1x1x1xi32>
    %368 = vector.broadcast %358 : i32 to vector<1x128xi32>
    %369 = arith.cmpi sge, %55, %368 : vector<1x128xi32>
    %370 = arith.extui %369 : vector<1x128xi1> to vector<1x128xi32>
    %371 = vector.shape_cast %370 : vector<1x128xi32> to vector<1x1x128xi32>
    %cst_66 = arith.constant dense<0> : vector<1xi32>
    %372 = vector.multi_reduction <add>, %371, %cst_66 [1, 2] : vector<1x1x128xi32> to vector<1xi32>
    %373 = vector.shape_cast %372 : vector<1xi32> to vector<1x1x1xi32>
    %374 = vector.extract %373[0, 0, 0] : i32 from vector<1x1x1xi32>
    %375 = vector.broadcast %359 : i32 to vector<1x128xi32>
    %376 = arith.cmpi sge, %55, %375 : vector<1x128xi32>
    %377 = arith.extui %376 : vector<1x128xi1> to vector<1x128xi32>
    %378 = vector.shape_cast %377 : vector<1x128xi32> to vector<1x1x128xi32>
    %cst_67 = arith.constant dense<0> : vector<1xi32>
    %379 = vector.multi_reduction <add>, %378, %cst_67 [1, 2] : vector<1x1x128xi32> to vector<1xi32>
    %380 = vector.shape_cast %379 : vector<1xi32> to vector<1x1x1xi32>
    %381 = vector.extract %380[0, 0, 0] : i32 from vector<1x1x1xi32>
    %382 = arith.cmpi sge, %367, %57 : i32
    %383 = arith.cmpi sge, %374, %57 : i32
    %384 = arith.cmpi sge, %381, %57 : i32
    %385 = arith.select %384, %359, %357 : i32
    %386 = arith.select %383, %358, %385 : i32
    %387 = arith.select %382, %360, %386 : i32
    %c256_i32 = arith.constant 256 : i32
    %388 = arith.ori %387, %c256_i32 : i32
    %c128_i32 = arith.constant 128 : i32
    %389 = arith.ori %387, %c128_i32 : i32
    %c128_i32_68 = arith.constant 128 : i32
    %390 = arith.ori %388, %c128_i32_68 : i32
    %391 = vector.broadcast %390 : i32 to vector<1x128xi32>
    %392 = arith.cmpi sge, %55, %391 : vector<1x128xi32>
    %393 = arith.extui %392 : vector<1x128xi1> to vector<1x128xi32>
    %394 = vector.shape_cast %393 : vector<1x128xi32> to vector<1x1x128xi32>
    %cst_69 = arith.constant dense<0> : vector<1xi32>
    %395 = vector.multi_reduction <add>, %394, %cst_69 [1, 2] : vector<1x1x128xi32> to vector<1xi32>
    %396 = vector.shape_cast %395 : vector<1xi32> to vector<1x1x1xi32>
    %397 = vector.extract %396[0, 0, 0] : i32 from vector<1x1x1xi32>
    %398 = vector.broadcast %388 : i32 to vector<1x128xi32>
    %399 = arith.cmpi sge, %55, %398 : vector<1x128xi32>
    %400 = arith.extui %399 : vector<1x128xi1> to vector<1x128xi32>
    %401 = vector.shape_cast %400 : vector<1x128xi32> to vector<1x1x128xi32>
    %cst_70 = arith.constant dense<0> : vector<1xi32>
    %402 = vector.multi_reduction <add>, %401, %cst_70 [1, 2] : vector<1x1x128xi32> to vector<1xi32>
    %403 = vector.shape_cast %402 : vector<1xi32> to vector<1x1x1xi32>
    %404 = vector.extract %403[0, 0, 0] : i32 from vector<1x1x1xi32>
    %405 = vector.broadcast %389 : i32 to vector<1x128xi32>
    %406 = arith.cmpi sge, %55, %405 : vector<1x128xi32>
    %407 = arith.extui %406 : vector<1x128xi1> to vector<1x128xi32>
    %408 = vector.shape_cast %407 : vector<1x128xi32> to vector<1x1x128xi32>
    %cst_71 = arith.constant dense<0> : vector<1xi32>
    %409 = vector.multi_reduction <add>, %408, %cst_71 [1, 2] : vector<1x1x128xi32> to vector<1xi32>
    %410 = vector.shape_cast %409 : vector<1xi32> to vector<1x1x1xi32>
    %411 = vector.extract %410[0, 0, 0] : i32 from vector<1x1x1xi32>
    %412 = arith.cmpi sge, %397, %57 : i32
    %413 = arith.cmpi sge, %404, %57 : i32
    %414 = arith.cmpi sge, %411, %57 : i32
    %415 = arith.select %414, %389, %387 : i32
    %416 = arith.select %413, %388, %415 : i32
    %417 = arith.select %412, %390, %416 : i32
    %c64_i32 = arith.constant 64 : i32
    %418 = arith.ori %417, %c64_i32 : i32
    %c32_i32 = arith.constant 32 : i32
    %419 = arith.ori %417, %c32_i32 : i32
    %c32_i32_72 = arith.constant 32 : i32
    %420 = arith.ori %418, %c32_i32_72 : i32
    %421 = vector.broadcast %420 : i32 to vector<1x128xi32>
    %422 = arith.cmpi sge, %55, %421 : vector<1x128xi32>
    %423 = arith.extui %422 : vector<1x128xi1> to vector<1x128xi32>
    %424 = vector.shape_cast %423 : vector<1x128xi32> to vector<1x1x128xi32>
    %cst_73 = arith.constant dense<0> : vector<1xi32>
    %425 = vector.multi_reduction <add>, %424, %cst_73 [1, 2] : vector<1x1x128xi32> to vector<1xi32>
    %426 = vector.shape_cast %425 : vector<1xi32> to vector<1x1x1xi32>
    %427 = vector.extract %426[0, 0, 0] : i32 from vector<1x1x1xi32>
    %428 = vector.broadcast %418 : i32 to vector<1x128xi32>
    %429 = arith.cmpi sge, %55, %428 : vector<1x128xi32>
    %430 = arith.extui %429 : vector<1x128xi1> to vector<1x128xi32>
    %431 = vector.shape_cast %430 : vector<1x128xi32> to vector<1x1x128xi32>
    %cst_74 = arith.constant dense<0> : vector<1xi32>
    %432 = vector.multi_reduction <add>, %431, %cst_74 [1, 2] : vector<1x1x128xi32> to vector<1xi32>
    %433 = vector.shape_cast %432 : vector<1xi32> to vector<1x1x1xi32>
    %434 = vector.extract %433[0, 0, 0] : i32 from vector<1x1x1xi32>
    %435 = vector.broadcast %419 : i32 to vector<1x128xi32>
    %436 = arith.cmpi sge, %55, %435 : vector<1x128xi32>
    %437 = arith.extui %436 : vector<1x128xi1> to vector<1x128xi32>
    %438 = vector.shape_cast %437 : vector<1x128xi32> to vector<1x1x128xi32>
    %cst_75 = arith.constant dense<0> : vector<1xi32>
    %439 = vector.multi_reduction <add>, %438, %cst_75 [1, 2] : vector<1x1x128xi32> to vector<1xi32>
    %440 = vector.shape_cast %439 : vector<1xi32> to vector<1x1x1xi32>
    %441 = vector.extract %440[0, 0, 0] : i32 from vector<1x1x1xi32>
    %442 = arith.cmpi sge, %427, %57 : i32
    %443 = arith.cmpi sge, %434, %57 : i32
    %444 = arith.cmpi sge, %441, %57 : i32
    %445 = arith.select %444, %419, %417 : i32
    %446 = arith.select %443, %418, %445 : i32
    %447 = arith.select %442, %420, %446 : i32
    %c16_i32 = arith.constant 16 : i32
    %448 = arith.ori %447, %c16_i32 : i32
    %c8_i32 = arith.constant 8 : i32
    %449 = arith.ori %447, %c8_i32 : i32
    %c8_i32_76 = arith.constant 8 : i32
    %450 = arith.ori %448, %c8_i32_76 : i32
    %451 = vector.broadcast %450 : i32 to vector<1x128xi32>
    %452 = arith.cmpi sge, %55, %451 : vector<1x128xi32>
    %453 = arith.extui %452 : vector<1x128xi1> to vector<1x128xi32>
    %454 = vector.shape_cast %453 : vector<1x128xi32> to vector<1x1x128xi32>
    %cst_77 = arith.constant dense<0> : vector<1xi32>
    %455 = vector.multi_reduction <add>, %454, %cst_77 [1, 2] : vector<1x1x128xi32> to vector<1xi32>
    %456 = vector.shape_cast %455 : vector<1xi32> to vector<1x1x1xi32>
    %457 = vector.extract %456[0, 0, 0] : i32 from vector<1x1x1xi32>
    %458 = vector.broadcast %448 : i32 to vector<1x128xi32>
    %459 = arith.cmpi sge, %55, %458 : vector<1x128xi32>
    %460 = arith.extui %459 : vector<1x128xi1> to vector<1x128xi32>
    %461 = vector.shape_cast %460 : vector<1x128xi32> to vector<1x1x128xi32>
    %cst_78 = arith.constant dense<0> : vector<1xi32>
    %462 = vector.multi_reduction <add>, %461, %cst_78 [1, 2] : vector<1x1x128xi32> to vector<1xi32>
    %463 = vector.shape_cast %462 : vector<1xi32> to vector<1x1x1xi32>
    %464 = vector.extract %463[0, 0, 0] : i32 from vector<1x1x1xi32>
    %465 = vector.broadcast %449 : i32 to vector<1x128xi32>
    %466 = arith.cmpi sge, %55, %465 : vector<1x128xi32>
    %467 = arith.extui %466 : vector<1x128xi1> to vector<1x128xi32>
    %468 = vector.shape_cast %467 : vector<1x128xi32> to vector<1x1x128xi32>
    %cst_79 = arith.constant dense<0> : vector<1xi32>
    %469 = vector.multi_reduction <add>, %468, %cst_79 [1, 2] : vector<1x1x128xi32> to vector<1xi32>
    %470 = vector.shape_cast %469 : vector<1xi32> to vector<1x1x1xi32>
    %471 = vector.extract %470[0, 0, 0] : i32 from vector<1x1x1xi32>
    %472 = arith.cmpi sge, %457, %57 : i32
    %473 = arith.cmpi sge, %464, %57 : i32
    %474 = arith.cmpi sge, %471, %57 : i32
    %475 = arith.select %474, %449, %447 : i32
    %476 = arith.select %473, %448, %475 : i32
    %477 = arith.select %472, %450, %476 : i32
    %c4_i32 = arith.constant 4 : i32
    %478 = arith.ori %477, %c4_i32 : i32
    %c2_i32 = arith.constant 2 : i32
    %479 = arith.ori %477, %c2_i32 : i32
    %c2_i32_80 = arith.constant 2 : i32
    %480 = arith.ori %478, %c2_i32_80 : i32
    %481 = vector.broadcast %480 : i32 to vector<1x128xi32>
    %482 = arith.cmpi sge, %55, %481 : vector<1x128xi32>
    %483 = arith.extui %482 : vector<1x128xi1> to vector<1x128xi32>
    %484 = vector.shape_cast %483 : vector<1x128xi32> to vector<1x1x128xi32>
    %cst_81 = arith.constant dense<0> : vector<1xi32>
    %485 = vector.multi_reduction <add>, %484, %cst_81 [1, 2] : vector<1x1x128xi32> to vector<1xi32>
    %486 = vector.shape_cast %485 : vector<1xi32> to vector<1x1x1xi32>
    %487 = vector.extract %486[0, 0, 0] : i32 from vector<1x1x1xi32>
    %488 = vector.broadcast %478 : i32 to vector<1x128xi32>
    %489 = arith.cmpi sge, %55, %488 : vector<1x128xi32>
    %490 = arith.extui %489 : vector<1x128xi1> to vector<1x128xi32>
    %491 = vector.shape_cast %490 : vector<1x128xi32> to vector<1x1x128xi32>
    %cst_82 = arith.constant dense<0> : vector<1xi32>
    %492 = vector.multi_reduction <add>, %491, %cst_82 [1, 2] : vector<1x1x128xi32> to vector<1xi32>
    %493 = vector.shape_cast %492 : vector<1xi32> to vector<1x1x1xi32>
    %494 = vector.extract %493[0, 0, 0] : i32 from vector<1x1x1xi32>
    %495 = vector.broadcast %479 : i32 to vector<1x128xi32>
    %496 = arith.cmpi sge, %55, %495 : vector<1x128xi32>
    %497 = arith.extui %496 : vector<1x128xi1> to vector<1x128xi32>
    %498 = vector.shape_cast %497 : vector<1x128xi32> to vector<1x1x128xi32>
    %cst_83 = arith.constant dense<0> : vector<1xi32>
    %499 = vector.multi_reduction <add>, %498, %cst_83 [1, 2] : vector<1x1x128xi32> to vector<1xi32>
    %500 = vector.shape_cast %499 : vector<1xi32> to vector<1x1x1xi32>
    %501 = vector.extract %500[0, 0, 0] : i32 from vector<1x1x1xi32>
    %502 = arith.cmpi sge, %487, %57 : i32
    %503 = arith.cmpi sge, %494, %57 : i32
    %504 = arith.cmpi sge, %501, %57 : i32
    %505 = arith.select %504, %479, %477 : i32
    %506 = arith.select %503, %478, %505 : i32
    %507 = arith.select %502, %480, %506 : i32
    %c1_i32 = arith.constant 1 : i32
    %508 = arith.ori %507, %c1_i32 : i32
    %509 = vector.broadcast %508 : i32 to vector<1x128xi32>
    %510 = arith.cmpi sge, %55, %509 : vector<1x128xi32>
    %511 = arith.extui %510 : vector<1x128xi1> to vector<1x128xi32>
    %512 = vector.shape_cast %511 : vector<1x128xi32> to vector<1x1x128xi32>
    %cst_84 = arith.constant dense<0> : vector<1xi32>
    %513 = vector.multi_reduction <add>, %512, %cst_84 [1, 2] : vector<1x1x128xi32> to vector<1xi32>
    %514 = vector.shape_cast %513 : vector<1xi32> to vector<1x1x1xi32>
    %515 = vector.extract %514[0, 0, 0] : i32 from vector<1x1x1xi32>
    %516 = arith.cmpi sge, %515, %57 : i32
    %517 = arith.select %516, %508, %507 : i32
    %518 = vector.broadcast %517 : i32 to vector<1x128xi32>
    %519 = arith.cmpi sgt, %55, %518 : vector<1x128xi32>
    %520 = arith.extui %519 : vector<1x128xi1> to vector<1x128xi32>
    %521 = vector.shape_cast %520 : vector<1x128xi32> to vector<1x1x128xi32>
    %cst_85 = arith.constant dense<0> : vector<1xi32>
    %522 = vector.multi_reduction <add>, %521, %cst_85 [1, 2] : vector<1x1x128xi32> to vector<1xi32>
    %523 = vector.shape_cast %522 : vector<1xi32> to vector<1x1x1xi32>
    %524 = vector.extract %523[0, 0, 0] : i32 from vector<1x1x1xi32>
    %cst_86 = arith.constant 0.000000e+00 : f32
    %525 = vector.broadcast %cst_86 : f32 to vector<1x128xf32>
    %526 = arith.select %519, %54, %525 : vector<1x128xi1>, vector<1x128xf32>
    %527 = vector.shape_cast %526 : vector<1x128xf32> to vector<1x1x128xf32>
    %cst_87 = arith.constant dense<0.000000e+00> : vector<1xf32>
    %528 = vector.multi_reduction <add>, %527, %cst_87 [1, 2] : vector<1x1x128xf32> to vector<1xf32>
    %529 = vector.shape_cast %528 : vector<1xf32> to vector<1x1x1xf32>
    %530 = vector.extract %529[0, 0, 0] : f32 from vector<1x1x1xf32>
    %531 = vector.broadcast %517 : i32 to vector<1x128xi32>
    %532 = arith.cmpi eq, %55, %531 : vector<1x128xi32>
    %cst_88 = arith.constant 0.000000e+00 : f32
    %533 = vector.broadcast %cst_88 : f32 to vector<1x128xf32>
    %534 = arith.select %532, %54, %533 : vector<1x128xi1>, vector<1x128xf32>
    %535 = vector.shape_cast %534 : vector<1x128xf32> to vector<1x1x128xf32>
    %cst_89 = arith.constant dense<0xFF800000> : vector<1xf32>
    %536 = vector.multi_reduction <maximumf>, %535, %cst_89 [1, 2] : vector<1x1x128xf32> to vector<1xf32>
    %537 = vector.shape_cast %536 : vector<1xf32> to vector<1x1x1xf32>
    %538 = vector.extract %537[0, 0, 0] : f32 from vector<1x1x1xf32>
    %539 = arith.subi %57, %524 : i32
    %540 = arith.sitofp %539 : i32 to f32
    %541 = arith.mulf %540, %538 : f32
    %542 = arith.addf %530, %541 : f32
    %543 = arith.mulf %50, %11 : vector<1x128xf32>
    %544 = vector.shape_cast %543 : vector<1x128xf32> to vector<1x1x128xf32>
    %cst_90 = arith.constant dense<0.000000e+00> : vector<1xf32>
    %545 = vector.multi_reduction <add>, %544, %cst_90 [1, 2] : vector<1x1x128xf32> to vector<1xf32>
    %546 = vector.shape_cast %545 : vector<1xf32> to vector<1x1x1xf32>
    %547 = vector.extract %546[0, 0, 0] : f32 from vector<1x1x1xf32>
    %548 = arith.addf %547, %542 : f32
    %549 = tpu.iota {dimensions = array<i32: 1>} : vector<1x128xi32>
    %c0_i32_91 = arith.constant 0 : i32
    %550 = vector.broadcast %c0_i32_91 : i32 to vector<1x128xi32>
    %551 = arith.cmpi eq, %549, %550 : vector<1x128xi32>
    %cst_92 = arith.constant 0.000000e+00 : f32
    %552 = vector.broadcast %33 : f32 to vector<1x128xf32>
    %553 = vector.broadcast %cst_92 : f32 to vector<1x128xf32>
    %554 = arith.select %551, %552, %553 : vector<1x128xi1>, vector<1x128xf32>
    %c1_i32_93 = arith.constant 1 : i32
    %555 = vector.broadcast %c1_i32_93 : i32 to vector<1x128xi32>
    %556 = arith.cmpi eq, %549, %555 : vector<1x128xi32>
    %cst_94 = arith.constant 0.000000e+00 : f32
    %557 = vector.broadcast %548 : f32 to vector<1x128xf32>
    %558 = vector.broadcast %cst_94 : f32 to vector<1x128xf32>
    %559 = arith.select %556, %557, %558 : vector<1x128xi1>, vector<1x128xf32>
    %560 = arith.addf %554, %559 : vector<1x128xf32>
    %c2_i32_95 = arith.constant 2 : i32
    %561 = vector.broadcast %c2_i32_95 : i32 to vector<1x128xi32>
    %562 = arith.cmpi eq, %549, %561 : vector<1x128xi32>
    %cst_96 = arith.constant 0.000000e+00 : f32
    %563 = vector.broadcast %17 : f32 to vector<1x128xf32>
    %564 = vector.broadcast %cst_96 : f32 to vector<1x128xf32>
    %565 = arith.select %562, %563, %564 : vector<1x128xi1>, vector<1x128xf32>
    %566 = arith.addf %560, %565 : vector<1x128xf32>
    %c0_97 = arith.constant 0 : index
    %c0_98 = arith.constant 0 : index
    %c0_99 = arith.constant 0 : index
    %567 = vector.load %arg5[%c0_97, %c0_98, %c0_99] : memref<1x1x128xf32, #tpu.memory_space<vmem>>, vector<1x1x128xf32>
    %568 = vector.shape_cast %567 : vector<1x1x128xf32> to vector<1x128xf32>
    %569 = vector.shape_cast %566 : vector<1x128xf32> to vector<1x1x128xf32>
    tpu.vector_store %arg5[%c0_97, %c0_98, %c0_99], %569 {strides = array<i32>} : memref<1x1x128xf32, #tpu.memory_space<vmem>>, vector<1x1x128xf32>,
    return
  }
  func.func @transform_0(%arg0: i32) -> (i32, i32, i32) {
    %c0_i32 = arith.constant 0 : i32
    %c0_i32_0 = arith.constant 0 : i32
    %c0_i32_1 = arith.constant 0 : i32
    return %arg0, %c0_i32, %c0_i32_0 : i32, i32, i32
  }
  func.func @transform_1(%arg0: i32) -> (i32, i32, i32) {
    %c0_i32 = arith.constant 0 : i32
    %c0_i32_0 = arith.constant 0 : i32
    %c0_i32_1 = arith.constant 0 : i32
    return %arg0, %c0_i32, %c0_i32_0 : i32, i32, i32
  }
  func.func @transform_2(%arg0: i32) -> (i32, i32, i32) {
    %c0_i32 = arith.constant 0 : i32
    %c0_i32_0 = arith.constant 0 : i32
    %c0_i32_1 = arith.constant 0 : i32
    return %arg0, %c0_i32, %c0_i32_0 : i32, i32, i32
  }
  func.func @transform_3(%arg0: i32) -> (i32, i32, i32) {
    %c0_i32 = arith.constant 0 : i32
    %c0_i32_0 = arith.constant 0 : i32
    %c0_i32_1 = arith.constant 0 : i32
    return %arg0, %c0_i32, %c0_i32_0 : i32, i32, i32
  }
  func.func @transform_4(%arg0: i32) -> (i32, i32, i32) {
    %c0_i32 = arith.constant 0 : i32
    %c0_i32_0 = arith.constant 0 : i32
    %c0_i32_1 = arith.constant 0 : i32
    return %arg0, %c0_i32, %c0_i32_0 : i32, i32, i32
  }
}

</mosaic_0001>

<llo_original>
// kernel: tpu_custom_call.1
$region0: #{tpu_custom_call.1}
  #allocation0 [shape = 'u32[]', space=smem, size = 0x4, offset = 0x4, fixed_abs, tag = 'smem constant byte address 0x4 - core index']
  #allocation1 [shape = 'u32[144,128]{1,0:T(1,128)}', space=vmem, size = 0x12000, scoped, tag = 'internal scratch']
  %s0 = inlined_call_operand.hbm [shape: f32[2,4,128], index: 0, kind: input, shape index: {}]
  %s1 = inlined_call_operand.hbm [shape: f32[2,8,128], index: 1, kind: input, shape index: {}]
  %s2 = inlined_call_operand.hbm [shape: f32[2,4,128], index: 2, kind: input, shape index: {}]
  %s3 = inlined_call_operand.vmem [shape: s32[2,1,128], index: 3, kind: input, shape index: {}]
  %s4 = inlined_call_operand.hbm [shape: f32[2,1,128], index: 4, kind: output, shape index: {}]
  %s5 = sld [smem:[#allocation0]]
  $region61: #{tpu_custom_call.1} parent=0
    _
  %s7 = ssub.s32 1, %s5
  %s8 = scalar_select 0, %s7, %s5
  $region1: #{tpu_custom_call.1} parent=0
    #allocation2 [shape = 'u8[4096]{0}', space=vmem, size = 0x1000, scoped, tag = 'input window, operand 0']
    #allocation3 [shape = 's32[2]{0}', space=sflag, size = 0x8, scoped, tag = 'scoped memory for tpu_custom_call.1']
    #allocation4 [shape = 's32[2]{0}', space=sflag, size = 0x8, scoped, tag = 'scoped memory for tpu_custom_call.1']
    #allocation5 [shape = 'u8[8192]{0}', space=vmem, size = 0x2000, scoped, tag = 'input window, operand 1']
    #allocation6 [shape = 's32[2]{0}', space=sflag, size = 0x8, scoped, tag = 'scoped memory for tpu_custom_call.1']
    #allocation7 [shape = 'u8[4096]{0}', space=vmem, size = 0x1000, scoped, tag = 'input window, operand 2']
    #allocation8 [shape = 'u8[1024]{0}', space=vmem, size = 0x400, scoped, tag = 'output window, operand 0']
    %9 = vsyncpa [#allocation3], 0
    %s10 = scalar_lea.sflag [#allocation3], 1
    %11 = vsyncpa %s10, 0
    %12 = vsyncpa [#allocation6], 0
    %s13 = scalar_lea.sflag [#allocation6], 1
    %14 = vsyncpa %s13, 0
    %15 = vsyncpa [#allocation4], 0
    %s16 = scalar_lea.sflag [#allocation4], 1
    %17 = vsyncpa %s16, 0
    loop: start=0, step=1, limit=4
    $region2: #{tpu_custom_call.1} parent=1 // loop_pre_header
      _
    $region3: #{tpu_custom_call.1} parent=1 // loop_header
      %s19 = sphi 0, %s23
      %p20 = scmp.ge.s32.totalorder %s19, 4
      %s29 = sphi 0, %s31
      %s32 = sphi 0, %s29
      %s33 = sphi 0, %s32
      %s49 = sphi 0, %s33
      %s55 = sphi 0, %s57
      %s58 = sphi 0, %s55
      %s59 = sphi 0, %s58
      %s75 = sphi 0, %s59
      %s81 = sphi 0, %s83
      %s84 = sphi 0, %s81
      %s85 = sphi 0, %s84
      %s101 = sphi 0, %s85
      %s107 = sphi 0, %s109
      %s110 = sphi 0, %s107
      %s111 = sphi 0, %s110
      %s127 = sphi 0, %s111
      %s133 = sphi 0, %s135
      %s136 = sphi 0, %s133
      %s137 = sphi 0, %s136
      %s153 = sphi 0, %s137
    $region4: #{tpu_custom_call.1} parent=1 // loop_header_branch
      %22 = sbr.rel (%p20) target = $region8
    $region5: #{tpu_custom_call.1} parent=1 // loop_body
      %s24 = ssub.s32 %s19, 1
      %s25 = ssub.s32 %s19, 2
      %s26 = sadd.s32 %s19, 1
      %s27 = ssub.s32 %s19, %s26
      %p28 = scmp.eq.s32.totalorder %s27, 0
      %s30 = sadd.s32 %s29, 1
      %s31 = scalar_select %p28, %s29, %s30
      %p34 = pneg %p28
      %p35 = scmp.eq.s32.totalorder %s19, 1
      %p36 = por %p34, %p35
      %p37 = scmp.ne.s32.totalorder %s29, %s32
      %p38 = scmp.eq.s32.totalorder %s19, 0
      %p39 = por %p37, %p38
      %p40 = scmp.ne.s32.totalorder %s29, %s32
      %p41 = scmp.eq.s32.totalorder %s24, 1
      %p42 = por %p40, %p41
      %p43 = scmp.ne.s32.totalorder %s32, %s33
      %p44 = scmp.eq.s32.totalorder %s24, 0
      %p45 = por %p43, %p44
      %p46 = scmp.ne.s32.totalorder %s32, %s33
      %p47 = scmp.eq.s32.totalorder %s25, 1
      %p48 = por %p46, %p47
      %p50 = scmp.ne.s32.totalorder %s33, %s49
      %p51 = scmp.eq.s32.totalorder %s25, 0
      %p52 = por %p50, %p51
      %s53 = ssub.s32 %s19, %s26
      %p54 = scmp.eq.s32.totalorder %s53, 0
      %s56 = sadd.s32 %s55, 1
      %s57 = scalar_select %p54, %s55, %s56
      %p60 = pneg %p54
      %p61 = scmp.eq.s32.totalorder %s19, 1
      %p62 = por %p60, %p61
      %p63 = scmp.ne.s32.totalorder %s55, %s58
      %p64 = scmp.eq.s32.totalorder %s19, 0
      %p65 = por %p63, %p64
      %p66 = scmp.ne.s32.totalorder %s55, %s58
      %p67 = scmp.eq.s32.totalorder %s24, 1
      %p68 = por %p66, %p67
      %p69 = scmp.ne.s32.totalorder %s58, %s59
      %p70 = scmp.eq.s32.totalorder %s24, 0
      %p71 = por %p69, %p70
      %p72 = scmp.ne.s32.totalorder %s58, %s59
      %p73 = scmp.eq.s32.totalorder %s25, 1
      %p74 = por %p72, %p73
      %p76 = scmp.ne.s32.totalorder %s59, %s75
      %p77 = scmp.eq.s32.totalorder %s25, 0
      %p78 = por %p76, %p77
      %s79 = ssub.s32 %s19, %s26
      %p80 = scmp.eq.s32.totalorder %s79, 0
      %s82 = sadd.s32 %s81, 1
      %s83 = scalar_select %p80, %s81, %s82
      %p86 = pneg %p80
      %p87 = scmp.eq.s32.totalorder %s19, 1
      %p88 = por %p86, %p87
      %p89 = scmp.ne.s32.totalorder %s81, %s84
      %p90 = scmp.eq.s32.totalorder %s19, 0
      %p91 = por %p89, %p90
      %p92 = scmp.ne.s32.totalorder %s81, %s84
      %p93 = scmp.eq.s32.totalorder %s24, 1
      %p94 = por %p92, %p93
      %p95 = scmp.ne.s32.totalorder %s84, %s85
      %p96 = scmp.eq.s32.totalorder %s24, 0
      %p97 = por %p95, %p96
      %p98 = scmp.ne.s32.totalorder %s84, %s85
      %p99 = scmp.eq.s32.totalorder %s25, 1
      %p100 = por %p98, %p99
      %p102 = scmp.ne.s32.totalorder %s85, %s101
      %p103 = scmp.eq.s32.totalorder %s25, 0
      %p104 = por %p102, %p103
      %s105 = ssub.s32 %s19, %s26
      %p106 = scmp.eq.s32.totalorder %s105, 0
      %s108 = sadd.s32 %s107, 1
      %s109 = scalar_select %p106, %s107, %s108
      %p112 = pneg %p106
      %p113 = scmp.eq.s32.totalorder %s19, 1
      %p114 = por %p112, %p113
      %p115 = scmp.ne.s32.totalorder %s107, %s110
      %p116 = scmp.eq.s32.totalorder %s19, 0
      %p117 = por %p115, %p116
      %p118 = scmp.ne.s32.totalorder %s107, %s110
      %p119 = scmp.eq.s32.totalorder %s24, 1
      %p120 = por %p118, %p119
      %p121 = scmp.ne.s32.totalorder %s110, %s111
      %p122 = scmp.eq.s32.totalorder %s24, 0
      %p123 = por %p121, %p122
      %p124 = scmp.ne.s32.totalorder %s110, %s111
      %p125 = scmp.eq.s32.totalorder %s25, 1
      %p126 = por %p124, %p125
      %p128 = scmp.ne.s32.totalorder %s111, %s127
      %p129 = scmp.eq.s32.totalorder %s25, 0
      %p130 = por %p128, %p129
      %s131 = ssub.s32 %s19, %s26
      %p132 = scmp.eq.s32.totalorder %s131, 0
      %s134 = sadd.s32 %s133, 1
      %s135 = scalar_select %p132, %s133, %s134
      %p138 = pneg %p132
      %p139 = scmp.eq.s32.totalorder %s19, 1
      %p140 = por %p138, %p139
      %p141 = scmp.ne.s32.totalorder %s133, %s136
      %p142 = scmp.eq.s32.totalorder %s19, 0
      %p143 = por %p141, %p142
      %p144 = scmp.ne.s32.totalorder %s133, %s136
      %p145 = scmp.eq.s32.totalorder %s24, 1
      %p146 = por %p144, %p145
      %p147 = scmp.ne.s32.totalorder %s136, %s137
      %p148 = scmp.eq.s32.totalorder %s24, 0
      %p149 = por %p147, %p148
      %p150 = scmp.ne.s32.totalorder %s136, %s137
      %p151 = scmp.eq.s32.totalorder %s25, 1
      %p152 = por %p150, %p151
      %p154 = scmp.ne.s32.totalorder %s137, %s153
      %p155 = scmp.eq.s32.totalorder %s25, 0
      %p156 = por %p154, %p155
      %p157 = scmp.le.s32.totalorder 1, %s19
      %p158 = scmp.lt.s32.totalorder %s19, 3
      %p159 = pnand %p157, %p158
      %p160 = pneg %p159
      // Predicated region
      $region9: #{tpu_custom_call.1} parent=5 // pred_check
        _
      $region10: #{tpu_custom_call.1} parent=5 // pred_check_branch
        %162 = sbr.rel (%p159) target = $region12
      $region11: #{tpu_custom_call.1} parent=5 // pred_region
        %s163 = ssub.s32 %s19, 1
      $region12: #{tpu_custom_call.1} parent=5 // pred_fallthru
        _
      %p164 = scmp.lt.s32.totalorder %s19, 2
      // Predicated region
      $region13: #{tpu_custom_call.1} parent=5 // pred_check
        %p165 = pneg %p164
      $region14: #{tpu_custom_call.1} parent=5 // pred_check_branch
        %167 = sbr.rel (%p165) target = $region16
      $region15: #{tpu_custom_call.1} parent=5 // pred_region
        // Predicated region
        $region17: #{tpu_custom_call.1} parent=15 // pred_check
          %p168 = pneg %p39
        $region18: #{tpu_custom_call.1} parent=15 // pred_check_branch
          %170 = sbr.rel (%p168) target = $region20
        $region19: #{tpu_custom_call.1} parent=15 // pred_region
          %s171 = sand.u32 %s29, 1
          %s172 = scalar_lea.sflag [#allocation3], %s171
          %s173 = sand.u32 %s29, 1
          %s174 = smul.addr %s173, 4
          %s175 = scalar_lea.vmem [#allocation2], %s174
          %s177 = ssub.s32 64, 64
          %178 = vsyncadd %s172, %s177
          %s179 = smul.addr %s19, 64
          %s180 = scalar_lea.hbm %s0, %s179
          %s182 = sshll.u32 %s175, 4
          %s183 = int_to_ptr.vmem [resolvable:$true] %s182
          %185 = dma.hbm_to_vmem [thread:$0]  %s180, 64, %s183, %s172
        $region20: #{tpu_custom_call.1} parent=15 // pred_fallthru
          _
        // Predicated region
        $region21: #{tpu_custom_call.1} parent=15 // pred_check
          %p186 = pneg %p65
        $region22: #{tpu_custom_call.1} parent=15 // pred_check_branch
          %188 = sbr.rel (%p186) target = $region24
        $region23: #{tpu_custom_call.1} parent=15 // pred_region
          %s189 = sand.u32 %s19, 1
          %s190 = scalar_lea.sflag [#allocation6], %s189
          %s191 = sand.u32 %s55, 1
          %s192 = smul.addr %s191, 8
          %s193 = scalar_lea.vmem [#allocation5], %s192
          %s195 = ssub.s32 128, 128
          %196 = vsyncadd %s190, %s195
          %s197 = smul.addr %s19, 128
          %s198 = scalar_lea.hbm %s1, %s197
          %s200 = sshll.u32 %s193, 4
          %s201 = int_to_ptr.vmem [resolvable:$true] %s200
          %203 = dma.hbm_to_vmem [thread:$0]  %s198, 128, %s201, %s190
        $region24: #{tpu_custom_call.1} parent=15 // pred_fallthru
          _
        // Predicated region
        $region25: #{tpu_custom_call.1} parent=15 // pred_check
          %p204 = pneg %p91
        $region26: #{tpu_custom_call.1} parent=15 // pred_check_branch
          %206 = sbr.rel (%p204) target = $region28
        $region27: #{tpu_custom_call.1} parent=15 // pred_region
          %s207 = sand.u32 %s19, 1
          %s208 = scalar_lea.sflag [#allocation6], %s207
          %s209 = sand.u32 %s81, 1
          %s210 = smul.addr %s209, 4
          %s211 = scalar_lea.vmem [#allocation7], %s210
          %s213 = ssub.s32 64, 64
          %214 = vsyncadd %s208, %s213
          %s215 = smul.addr %s19, 64
          %s216 = scalar_lea.hbm %s2, %s215
          %s218 = sshll.u32 %s211, 4
          %s219 = int_to_ptr.vmem [resolvable:$true] %s218
          %221 = dma.hbm_to_vmem [thread:$0]  %s216, 64, %s219, %s208
        $region28: #{tpu_custom_call.1} parent=15 // pred_fallthru
          _
        // Predicated region
        $region29: #{tpu_custom_call.1} parent=15 // pred_check
          %p222 = pneg %p117
        $region30: #{tpu_custom_call.1} parent=15 // pred_check_branch
          %224 = sbr.rel (%p222) target = $region32
        $region31: #{tpu_custom_call.1} parent=15 // pred_region
          %p225 = scmp.lt.s32.totalorder %s19, 1
          %s226 = scalar_select %p225, %s19, 1
          %s227 = scalar_lea.vmem %s3, %s226
        $region32: #{tpu_custom_call.1} parent=15 // pred_fallthru
          _
      $region16: #{tpu_custom_call.1} parent=5 // pred_fallthru
        _
      %p228 = scmp.le.s32.totalorder 1, %s19
      %p229 = scmp.lt.s32.totalorder %s19, 3
      %p230 = pnand %p228, %p229
      %p231 = pneg %p230
      // Predicated region
      $region33: #{tpu_custom_call.1} parent=5 // pred_check
        _
      $region34: #{tpu_custom_call.1} parent=5 // pred_check_branch
        %233 = sbr.rel (%p230) target = $region36
      $region35: #{tpu_custom_call.1} parent=5 // pred_region
        %s234 = ssub.s32 %s19, 1
        %s235 = sand.u32 %s32, 1
        %s236 = scalar_lea.sflag [#allocation3], %s235
        %s237 = sand.u32 %s32, 1
        %s238 = smul.addr %s237, 4
        %s239 = scalar_lea.vmem [#allocation2], %s238
        // Predicated region
        $region37: #{tpu_custom_call.1} parent=35 // pred_check
          %p240 = pneg %p45
        $region38: #{tpu_custom_call.1} parent=35 // pred_check_branch
          %242 = sbr.rel (%p240) target = $region40
        $region39: #{tpu_custom_call.1} parent=35 // pred_region
          %243 = dma.done %s236, 64
        $region40: #{tpu_custom_call.1} parent=35 // pred_fallthru
          _
        %s244 = sand.u32 %s24, 1
        %s245 = scalar_lea.sflag [#allocation6], %s244
        %s246 = sand.u32 %s58, 1
        %s247 = smul.addr %s246, 8
        %s248 = scalar_lea.vmem [#allocation5], %s247
        // Predicated region
        $region41: #{tpu_custom_call.1} parent=35 // pred_check
          %p249 = pneg %p71
        $region42: #{tpu_custom_call.1} parent=35 // pred_check_branch
          %251 = sbr.rel (%p249) target = $region44
        $region43: #{tpu_custom_call.1} parent=35 // pred_region
          %252 = dma.done %s245, 128
        $region44: #{tpu_custom_call.1} parent=35 // pred_fallthru
          _
        %s253 = sand.u32 %s24, 1
        %s254 = scalar_lea.sflag [#allocation6], %s253
        %s255 = sand.u32 %s84, 1
        %s256 = smul.addr %s255, 4
        %s257 = scalar_lea.vmem [#allocation7], %s256
        // Predicated region
        $region45: #{tpu_custom_call.1} parent=35 // pred_check
          %p258 = pneg %p97
        $region46: #{tpu_custom_call.1} parent=35 // pred_check_branch
          %260 = sbr.rel (%p258) target = $region48
        $region47: #{tpu_custom_call.1} parent=35 // pred_region
          %261 = dma.done %s254, 64
        $region48: #{tpu_custom_call.1} parent=35 // pred_fallthru
          _
        %s262 = sand.u32 %s32, 1
        %s263 = scalar_lea.sflag [#allocation3], %s262
        %s264 = sand.u32 %s32, 1
        %s265 = smul.addr %s264, 4
        %s266 = scalar_lea.vmem [#allocation2], %s265
        %p267 = pneg %p45
        %p268 = pneg %p42
        %s269 = sand.u32 %s24, 1
        %s270 = scalar_lea.sflag [#allocation6], %s269
        %s271 = sand.u32 %s58, 1
        %s272 = smul.addr %s271, 8
        %s273 = scalar_lea.vmem [#allocation5], %s272
        %p274 = pneg %p71
        %p275 = pneg %p68
        %s276 = sand.u32 %s24, 1
        %s277 = scalar_lea.sflag [#allocation6], %s276
        %s278 = sand.u32 %s84, 1
        %s279 = smul.addr %s278, 4
        %s280 = scalar_lea.vmem [#allocation7], %s279
        %p281 = pneg %p97
        %p282 = pneg %p94
        %p283 = scmp.lt.s32.totalorder %s24, 1
        %s284 = scalar_select %p283, %s24, 1
        %s285 = scalar_lea.vmem %s3, %s284
        %p286 = pneg %p123
        %p287 = pneg %p120
        %p288 = pneg %p149
        %p289 = pneg %p146
        %s290 = sand.u32 %s136, 1
        %s291 = scalar_lea.sflag [#allocation4], %s290
        %s292 = sand.u32 %s136, 1
        %s293 = scalar_lea.vmem [#allocation8], %s292
        %p294 = scmp.lt.s32.totalorder %s24, 1
        %s295 = scalar_select %p294, %s24, 1
        %s296 = scalar_lea.vmem %s3, %s295
        %v297 = vld [vmem:[%s239] sm:$0xf]
        %v298 = vld [vmem:[%s248] sm:$0xff]
        %v299 = vld [vmem:[%s257] sm:$0xf]
        %v300 = vld [vmem:[%s296] sm:$0x1]
        %vm301 = vcmp.gt.s32.totalorder %v300, 0
        %v302 = vsel %vm301, 1, 0
        %v303 = vcvt.s32.f32 %v302
        %vm304 = vcmask 1040384
        %v305 = vsel %vm304, %v302, 0
        %v306 = vand.u32 %v305, 65535
        %v307 = vshrl.u32 %v305, 16
        %v308 = vcvt.s32.f32 %v306
        %v309 = vcvt.s32.f32 %v307
        %310 = vadd.xlane.f32.xlu0 %v308
        %v311 = vpop.xlane.xlu0 %310
        %312 = vadd.xlane.f32.xlu0 %v309
        %v313 = vpop.xlane.xlu0 %312
        %v314 = vcvt.f32.s32 %v311
        %v315 = vcvt.f32.s32 %v313
        %v316 = vshll.u32 %v315, 16
        %v317 = vadd.s32 %v316, %v314
        %v318 = vrot.slane %v317, 4
        %v319 = vadd.s32 %v317, %v318
        %v320 = vrot.slane %v319, 2
        %v321 = vadd.s32 %v319, %v320
        %v322 = vrot.slane %v321, 1
        %v323 = vadd.s32 %v321, %v322
        %s324 = vtos %v323
        %s325 = scvt.s32.f32 %s324
        %v326 = vsub.f32 %v297, %v299
        %v327 = vand.u32 2147483647, %v326
        %vm328 = vcmp.lt.f32.partialorder %v327, 1.0
        %v329 = vmul.f32 %v326, 0.5
        %v330 = vmul.f32 %v329, %v326
        %v331 = vsub.f32 %v327, 0.5
        %v332 = vsel %vm328, %v330, %v331
        %v334 = vlaneseq
        %v335 = vshrl.u32 %v334, 7
        %v336 = vsub.s32 0, %v335
        %v337 = vrot.slane %v303, %v336
        %v339 = vmul.f32 %v332, %v337
        %vm340 = vcmask 1043456
        %v341 = vsel %vm340, %v339, 0.0
        %342 = vadd.xlane.f32.xlu0 %v341
        %v343 = vpop.xlane.xlu0 %342
        %v344 = vrot.slane %v343, 4
        %v345 = vadd.f32 %v343, %v344
        %v346 = vrot.slane %v345, 2
        %v347 = vadd.f32 %v345, %v346
        %v348 = vrot.slane %v347, 1
        %v349 = vadd.f32 %v347, %v348
        %s350 = vtos %v349
        %v351 = vrot.slane %v298, 4
        %v352 = vmax.f32 %v298, %v351
        %v353 = vrot.slane %v352, 2
        %v354 = vmax.f32 %v352, %v353
        %v355 = vrot.slane %v354, 1
        %v356 = vmax.f32 %v354, %v355
        %v357 = vsub.f32 %v298, %v356
        %v358 = vmul.f32 %v357, 1.442695
        %v359 = vpow.pop %v358
        %v360 = vrot.slane %v359, 4
        %v361 = vadd.f32 %v359, %v360
        %v362 = vrot.slane %v361, 2
        %v363 = vadd.f32 %v361, %v362
        %v364 = vrot.slane %v363, 1
        %v365 = vadd.f32 %v363, %v364
        %v366 = vlog2.pop %v365
        %v367 = vmul.f32 %v366, 0.6931472
        %v368 = vadd.f32 %v367, %v356
        %v369 = vlaneseq
        %v370 = vshrl.u32 %v369, 7
        %v371 = vlaneseq
        %v372 = vshrl.u32 %v371, 7
        %v373 = vsub.s32 0, %v372
        %v374 = vrot.slane %v300, %v373
        %vm375 = vcmp.eq.s32.totalorder %v374, %v370
        %v376 = vsel %vm375, %v298, 0.0
        %v377 = vrot.slane %v376, 4
        %v378 = vadd.f32 %v376, %v377
        %v379 = vrot.slane %v378, 2
        %v380 = vadd.f32 %v378, %v379
        %v381 = vrot.slane %v380, 1
        %v382 = vadd.f32 %v380, %v381
        %v383 = vsub.f32 %v368, %v382
        %v384 = vsel %vm301, 0.0, %v383
        %v385 = vmax.f32 %v384, 0.0
        %s387 = smul.u32 %s324, 3
        %p388 = scmp.lt.s32.totalorder %s387, 127
        %s389 = scalar_select %p388, %s387, 127
        %vm390 = vcmp.ge.s32.totalorder %v385, 1610612736
        %v391 = vsel %vm390, 1, 0
        %v392 = vsel %vm304, %v391, 0
        %v393 = vand.u32 %v392, 65535
        %v394 = vshrl.u32 %v392, 16
        %v395 = vcvt.s32.f32 %v393
        %v396 = vcvt.s32.f32 %v394
        %397 = vadd.xlane.f32.xlu0 %v395
        %v398 = vpop.xlane.xlu0 %397
        %399 = vadd.xlane.f32.xlu0 %v396
        %v400 = vpop.xlane.xlu0 %399
        %v401 = vcvt.f32.s32 %v398
        %v402 = vcvt.f32.s32 %v400
        %v403 = vshll.u32 %v402, 16
        %v404 = vadd.s32 %v403, %v401
        %v405 = vrot.slane %v404, 4
        %v406 = vadd.s32 %v404, %v405
        %v407 = vrot.slane %v406, 2
        %v408 = vadd.s32 %v406, %v407
        %v409 = vrot.slane %v408, 1
        %v410 = vadd.s32 %v408, %v409
        %s411 = vtos %v410
        %vm412 = vcmp.ge.s32.totalorder %v385, 1073741824
        %v413 = vsel %vm412, 1, 0
        %v414 = vsel %vm304, %v413, 0
        %v415 = vand.u32 %v414, 65535
        %v416 = vshrl.u32 %v414, 16
        %v417 = vcvt.s32.f32 %v415
        %v418 = vcvt.s32.f32 %v416
        %419 = vadd.xlane.f32.xlu0 %v417
        %v420 = vpop.xlane.xlu0 %419
        %421 = vadd.xlane.f32.xlu0 %v418
        %v422 = vpop.xlane.xlu0 %421
        %v423 = vcvt.f32.s32 %v420
        %v424 = vcvt.f32.s32 %v422
        %v425 = vshll.u32 %v424, 16
        %v426 = vadd.s32 %v425, %v423
        %v427 = vrot.slane %v426, 4
        %v428 = vadd.s32 %v426, %v427
        %v429 = vrot.slane %v428, 2
        %v430 = vadd.s32 %v428, %v429
        %v431 = vrot.slane %v430, 1
        %v432 = vadd.s32 %v430, %v431
        %s433 = vtos %v432
        %vm434 = vcmp.ge.s32.totalorder %v385, 536870912
        %v435 = vsel %vm434, 1, 0
        %v436 = vsel %vm304, %v435, 0
        %v437 = vand.u32 %v436, 65535
        %v438 = vshrl.u32 %v436, 16
        %v439 = vcvt.s32.f32 %v437
        %v440 = vcvt.s32.f32 %v438
        %441 = vadd.xlane.f32.xlu0 %v439
        %v442 = vpop.xlane.xlu0 %441
        %443 = vadd.xlane.f32.xlu0 %v440
        %v444 = vpop.xlane.xlu0 %443
        %v445 = vcvt.f32.s32 %v442
        %v446 = vcvt.f32.s32 %v444
        %v447 = vshll.u32 %v446, 16
        %v448 = vadd.s32 %v447, %v445
        %v449 = vrot.slane %v448, 4
        %v450 = vadd.s32 %v448, %v449
        %v451 = vrot.slane %v450, 2
        %v452 = vadd.s32 %v450, %v451
        %v453 = vrot.slane %v452, 1
        %v454 = vadd.s32 %v452, %v453
        %s455 = vtos %v454
        %p456 = scmp.ge.s32.totalorder %s411, %s389
        %p457 = scmp.ge.s32.totalorder %s433, %s389
        %p458 = scmp.ge.s32.totalorder %s455, %s389
        %s459 = scalar_select %p458, 536870912, 0
        %s460 = scalar_select %p457, 1073741824, %s459
        %s461 = scalar_select %p456, 1610612736, %s460
        %s462 = sor.u32 %s461, 268435456
        %s463 = sor.u32 %s461, 134217728
        %s464 = sor.u32 %s462, 134217728
        %v465 = vstv %s464
        %vm466 = vcmp.ge.s32.totalorder %v385, %v465
        %v467 = vsel %vm466, 1, 0
        %v468 = vsel %vm304, %v467, 0
        %v469 = vand.u32 %v468, 65535
        %v470 = vshrl.u32 %v468, 16
        %v471 = vcvt.s32.f32 %v469
        %v472 = vcvt.s32.f32 %v470
        %473 = vadd.xlane.f32.xlu0 %v471
        %v474 = vpop.xlane.xlu0 %473
        %475 = vadd.xlane.f32.xlu0 %v472
        %v476 = vpop.xlane.xlu0 %475
        %v477 = vcvt.f32.s32 %v474
        %v478 = vcvt.f32.s32 %v476
        %v479 = vshll.u32 %v478, 16
        %v480 = vadd.s32 %v479, %v477
        %v481 = vrot.slane %v480, 4
        %v482 = vadd.s32 %v480, %v481
        %v483 = vrot.slane %v482, 2
        %v484 = vadd.s32 %v482, %v483
        %v485 = vrot.slane %v484, 1
        %v486 = vadd.s32 %v484, %v485
        %s487 = vtos %v486
        %v488 = vstv %s462
        %vm489 = vcmp.ge.s32.totalorder %v385, %v488
        %v490 = vsel %vm489, 1, 0
        %v491 = vsel %vm304, %v490, 0
        %v492 = vand.u32 %v491, 65535
        %v493 = vshrl.u32 %v491, 16
        %v494 = vcvt.s32.f32 %v492
        %v495 = vcvt.s32.f32 %v493
        %496 = vadd.xlane.f32.xlu0 %v494
        %v497 = vpop.xlane.xlu0 %496
        %498 = vadd.xlane.f32.xlu0 %v495
        %v499 = vpop.xlane.xlu0 %498
        %v500 = vcvt.f32.s32 %v497
        %v501 = vcvt.f32.s32 %v499
        %v502 = vshll.u32 %v501, 16
        %v503 = vadd.s32 %v502, %v500
        %v504 = vrot.slane %v503, 4
        %v505 = vadd.s32 %v503, %v504
        %v506 = vrot.slane %v505, 2
        %v507 = vadd.s32 %v505, %v506
        %v508 = vrot.slane %v507, 1
        %v509 = vadd.s32 %v507, %v508
        %s510 = vtos %v509
        %v511 = vstv %s463
        %vm512 = vcmp.ge.s32.totalorder %v385, %v511
        %v513 = vsel %vm512, 1, 0
        %v514 = vsel %vm304, %v513, 0
        %v515 = vand.u32 %v514, 65535
        %v516 = vshrl.u32 %v514, 16
        %v517 = vcvt.s32.f32 %v515
        %v518 = vcvt.s32.f32 %v516
        %519 = vadd.xlane.f32.xlu0 %v517
        %v520 = vpop.xlane.xlu0 %519
        %521 = vadd.xlane.f32.xlu0 %v518
        %v522 = vpop.xlane.xlu0 %521
        %v523 = vcvt.f32.s32 %v520
        %v524 = vcvt.f32.s32 %v522
        %v525 = vshll.u32 %v524, 16
        %v526 = vadd.s32 %v525, %v523
        %v527 = vrot.slane %v526, 4
        %v528 = vadd.s32 %v526, %v527
        %v529 = vrot.slane %v528, 2
        %v530 = vadd.s32 %v528, %v529
        %v531 = vrot.slane %v530, 1
        %v532 = vadd.s32 %v530, %v531
        %s533 = vtos %v532
        %p534 = scmp.ge.s32.totalorder %s487, %s389
        %p535 = scmp.ge.s32.totalorder %s510, %s389
        %p536 = scmp.ge.s32.totalorder %s533, %s389
        %s537 = scalar_select %p536, %s463, %s461
        %s538 = scalar_select %p535, %s462, %s537
        %s539 = scalar_select %p534, %s464, %s538
        %s540 = sor.u32 %s539, 67108864
        %s541 = sor.u32 %s539, 33554432
        %s542 = sor.u32 %s540, 33554432
        %v543 = vstv %s542
        %vm544 = vcmp.ge.s32.totalorder %v385, %v543
        %v545 = vsel %vm544, 1, 0
        %v546 = vsel %vm304, %v545, 0
        %v547 = vand.u32 %v546, 65535
        %v548 = vshrl.u32 %v546, 16
        %v549 = vcvt.s32.f32 %v547
        %v550 = vcvt.s32.f32 %v548
        %551 = vadd.xlane.f32.xlu0 %v549
        %v552 = vpop.xlane.xlu0 %551
        %553 = vadd.xlane.f32.xlu0 %v550
        %v554 = vpop.xlane.xlu0 %553
        %v555 = vcvt.f32.s32 %v552
        %v556 = vcvt.f32.s32 %v554
        %v557 = vshll.u32 %v556, 16
        %v558 = vadd.s32 %v557, %v555
        %v559 = vrot.slane %v558, 4
        %v560 = vadd.s32 %v558, %v559
        %v561 = vrot.slane %v560, 2
        %v562 = vadd.s32 %v560, %v561
        %v563 = vrot.slane %v562, 1
        %v564 = vadd.s32 %v562, %v563
        %s565 = vtos %v564
        %v566 = vstv %s540
        %vm567 = vcmp.ge.s32.totalorder %v385, %v566
        %v568 = vsel %vm567, 1, 0
        %v569 = vsel %vm304, %v568, 0
        %v570 = vand.u32 %v569, 65535
        %v571 = vshrl.u32 %v569, 16
        %v572 = vcvt.s32.f32 %v570
        %v573 = vcvt.s32.f32 %v571
        %574 = vadd.xlane.f32.xlu0 %v572
        %v575 = vpop.xlane.xlu0 %574
        %576 = vadd.xlane.f32.xlu0 %v573
        %v577 = vpop.xlane.xlu0 %576
        %v578 = vcvt.f32.s32 %v575
        %v579 = vcvt.f32.s32 %v577
        %v580 = vshll.u32 %v579, 16
        %v581 = vadd.s32 %v580, %v578
        %v582 = vrot.slane %v581, 4
        %v583 = vadd.s32 %v581, %v582
        %v584 = vrot.slane %v583, 2
        %v585 = vadd.s32 %v583, %v584
        %v586 = vrot.slane %v585, 1
        %v587 = vadd.s32 %v585, %v586
        %s588 = vtos %v587
        %v589 = vstv %s541
        %vm590 = vcmp.ge.s32.totalorder %v385, %v589
        %v591 = vsel %vm590, 1, 0
        %v592 = vsel %vm304, %v591, 0
        %v593 = vand.u32 %v592, 65535
        %v594 = vshrl.u32 %v592, 16
        %v595 = vcvt.s32.f32 %v593
        %v596 = vcvt.s32.f32 %v594
        %597 = vadd.xlane.f32.xlu0 %v595
        %v598 = vpop.xlane.xlu0 %597
        %599 = vadd.xlane.f32.xlu0 %v596
        %v600 = vpop.xlane.xlu0 %599
        %v601 = vcvt.f32.s32 %v598
        %v602 = vcvt.f32.s32 %v600
        %v603 = vshll.u32 %v602, 16
        %v604 = vadd.s32 %v603, %v601
        %v605 = vrot.slane %v604, 4
        %v606 = vadd.s32 %v604, %v605
        %v607 = vrot.slane %v606, 2
        %v608 = vadd.s32 %v606, %v607
        %v609 = vrot.slane %v608, 1
        %v610 = vadd.s32 %v608, %v609
        %s611 = vtos %v610
        %p612 = scmp.ge.s32.totalorder %s565, %s389
        %p613 = scmp.ge.s32.totalorder %s588, %s389
        %p614 = scmp.ge.s32.totalorder %s611, %s389
        %s615 = scalar_select %p614, %s541, %s539
        %s616 = scalar_select %p613, %s540, %s615
        %s617 = scalar_select %p612, %s542, %s616
        %s618 = sor.u32 %s617, 16777216
        %s619 = sor.u32 %s617, 8388608
        %s620 = sor.u32 %s618, 8388608
        %v621 = vstv %s620
        %vm622 = vcmp.ge.s32.totalorder %v385, %v621
        %v623 = vsel %vm622, 1, 0
        %v624 = vsel %vm304, %v623, 0
        %v625 = vand.u32 %v624, 65535
        %v626 = vshrl.u32 %v624, 16
        %v627 = vcvt.s32.f32 %v625
        %v628 = vcvt.s32.f32 %v626
        %629 = vadd.xlane.f32.xlu0 %v627
        %v630 = vpop.xlane.xlu0 %629
        %631 = vadd.xlane.f32.xlu0 %v628
        %v632 = vpop.xlane.xlu0 %631
        %v633 = vcvt.f32.s32 %v630
        %v634 = vcvt.f32.s32 %v632
        %v635 = vshll.u32 %v634, 16
        %v636 = vadd.s32 %v635, %v633
        %v637 = vrot.slane %v636, 4
        %v638 = vadd.s32 %v636, %v637
        %v639 = vrot.slane %v638, 2
        %v640 = vadd.s32 %v638, %v639
        %v641 = vrot.slane %v640, 1
        %v642 = vadd.s32 %v640, %v641
        %s643 = vtos %v642
        %v644 = vstv %s618
        %vm645 = vcmp.ge.s32.totalorder %v385, %v644
        %v646 = vsel %vm645, 1, 0
        %v647 = vsel %vm304, %v646, 0
        %v648 = vand.u32 %v647, 65535
        %v649 = vshrl.u32 %v647, 16
        %v650 = vcvt.s32.f32 %v648
        %v651 = vcvt.s32.f32 %v649
        %652 = vadd.xlane.f32.xlu0 %v650
        %v653 = vpop.xlane.xlu0 %652
        %654 = vadd.xlane.f32.xlu0 %v651
        %v655 = vpop.xlane.xlu0 %654
        %v656 = vcvt.f32.s32 %v653
        %v657 = vcvt.f32.s32 %v655
        %v658 = vshll.u32 %v657, 16
        %v659 = vadd.s32 %v658, %v656
        %v660 = vrot.slane %v659, 4
        %v661 = vadd.s32 %v659, %v660
        %v662 = vrot.slane %v661, 2
        %v663 = vadd.s32 %v661, %v662
        %v664 = vrot.slane %v663, 1
        %v665 = vadd.s32 %v663, %v664
        %s666 = vtos %v665
        %v667 = vstv %s619
        %vm668 = vcmp.ge.s32.totalorder %v385, %v667
        %v669 = vsel %vm668, 1, 0
        %v670 = vsel %vm304, %v669, 0
        %v671 = vand.u32 %v670, 65535
        %v672 = vshrl.u32 %v670, 16
        %v673 = vcvt.s32.f32 %v671
        %v674 = vcvt.s32.f32 %v672
        %675 = vadd.xlane.f32.xlu0 %v673
        %v676 = vpop.xlane.xlu0 %675
        %677 = vadd.xlane.f32.xlu0 %v674
        %v678 = vpop.xlane.xlu0 %677
        %v679 = vcvt.f32.s32 %v676
        %v680 = vcvt.f32.s32 %v678
        %v681 = vshll.u32 %v680, 16
        %v682 = vadd.s32 %v681, %v679
        %v683 = vrot.slane %v682, 4
        %v684 = vadd.s32 %v682, %v683
        %v685 = vrot.slane %v684, 2
        %v686 = vadd.s32 %v684, %v685
        %v687 = vrot.slane %v686, 1
        %v688 = vadd.s32 %v686, %v687
        %s689 = vtos %v688
        %p690 = scmp.ge.s32.totalorder %s643, %s389
        %p691 = scmp.ge.s32.totalorder %s666, %s389
        %p692 = scmp.ge.s32.totalorder %s689, %s389
        %s693 = scalar_select %p692, %s619, %s617
        %s694 = scalar_select %p691, %s618, %s693
        %s695 = scalar_select %p690, %s620, %s694
        %s696 = sor.u32 %s695, 4194304
        %s697 = sor.u32 %s695, 2097152
        %s698 = sor.u32 %s696, 2097152
        %v699 = vstv %s698
        %vm700 = vcmp.ge.s32.totalorder %v385, %v699
        %v701 = vsel %vm700, 1, 0
        %v702 = vsel %vm304, %v701, 0
        %v703 = vand.u32 %v702, 65535
        %v704 = vshrl.u32 %v702, 16
        %v705 = vcvt.s32.f32 %v703
        %v706 = vcvt.s32.f32 %v704
        %707 = vadd.xlane.f32.xlu0 %v705
        %v708 = vpop.xlane.xlu0 %707
        %709 = vadd.xlane.f32.xlu0 %v706
        %v710 = vpop.xlane.xlu0 %709
        %v711 = vcvt.f32.s32 %v708
        %v712 = vcvt.f32.s32 %v710
        %v713 = vshll.u32 %v712, 16
        %v714 = vadd.s32 %v713, %v711
        %v715 = vrot.slane %v714, 4
        %v716 = vadd.s32 %v714, %v715
        %v717 = vrot.slane %v716, 2
        %v718 = vadd.s32 %v716, %v717
        %v719 = vrot.slane %v718, 1
        %v720 = vadd.s32 %v718, %v719
        %s721 = vtos %v720
        %v722 = vstv %s696
        %vm723 = vcmp.ge.s32.totalorder %v385, %v722
        %v724 = vsel %vm723, 1, 0
        %v725 = vsel %vm304, %v724, 0
        %v726 = vand.u32 %v725, 65535
        %v727 = vshrl.u32 %v725, 16
        %v728 = vcvt.s32.f32 %v726
        %v729 = vcvt.s32.f32 %v727
        %730 = vadd.xlane.f32.xlu0 %v728
        %v731 = vpop.xlane.xlu0 %730
        %732 = vadd.xlane.f32.xlu0 %v729
        %v733 = vpop.xlane.xlu0 %732
        %v734 = vcvt.f32.s32 %v731
        %v735 = vcvt.f32.s32 %v733
        %v736 = vshll.u32 %v735, 16
        %v737 = vadd.s32 %v736, %v734
        %v738 = vrot.slane %v737, 4
        %v739 = vadd.s32 %v737, %v738
        %v740 = vrot.slane %v739, 2
        %v741 = vadd.s32 %v739, %v740
        %v742 = vrot.slane %v741, 1
        %v743 = vadd.s32 %v741, %v742
        %s744 = vtos %v743
        %v745 = vstv %s697
        %vm746 = vcmp.ge.s32.totalorder %v385, %v745
        %v747 = vsel %vm746, 1, 0
        %v748 = vsel %vm304, %v747, 0
        %v749 = vand.u32 %v748, 65535
        %v750 = vshrl.u32 %v748, 16
        %v751 = vcvt.s32.f32 %v749
        %v752 = vcvt.s32.f32 %v750
        %753 = vadd.xlane.f32.xlu0 %v751
        %v754 = vpop.xlane.xlu0 %753
        %755 = vadd.xlane.f32.xlu0 %v752
        %v756 = vpop.xlane.xlu0 %755
        %v757 = vcvt.f32.s32 %v754
        %v758 = vcvt.f32.s32 %v756
        %v759 = vshll.u32 %v758, 16
        %v760 = vadd.s32 %v759, %v757
        %v761 = vrot.slane %v760, 4
        %v762 = vadd.s32 %v760, %v761
        %v763 = vrot.slane %v762, 2
        %v764 = vadd.s32 %v762, %v763
        %v765 = vrot.slane %v764, 1
        %v766 = vadd.s32 %v764, %v765
        %s767 = vtos %v766
        %p768 = scmp.ge.s32.totalorder %s721, %s389
        %p769 = scmp.ge.s32.totalorder %s744, %s389
        %p770 = scmp.ge.s32.totalorder %s767, %s389
        %s771 = scalar_select %p770, %s697, %s695
        %s772 = scalar_select %p769, %s696, %s771
        %s773 = scalar_select %p768, %s698, %s772
        %s774 = sor.u32 %s773, 1048576
        %s775 = sor.u32 %s773, 524288
        %s776 = sor.u32 %s774, 524288
        %v777 = vstv %s776
        %vm778 = vcmp.ge.s32.totalorder %v385, %v777
        %v779 = vsel %vm778, 1, 0
        %v780 = vsel %vm304, %v779, 0
        %v781 = vand.u32 %v780, 65535
        %v782 = vshrl.u32 %v780, 16
        %v783 = vcvt.s32.f32 %v781
        %v784 = vcvt.s32.f32 %v782
        %785 = vadd.xlane.f32.xlu0 %v783
        %v786 = vpop.xlane.xlu0 %785
        %787 = vadd.xlane.f32.xlu0 %v784
        %v788 = vpop.xlane.xlu0 %787
        %v789 = vcvt.f32.s32 %v786
        %v790 = vcvt.f32.s32 %v788
        %v791 = vshll.u32 %v790, 16
        %v792 = vadd.s32 %v791, %v789
        %v793 = vrot.slane %v792, 4
        %v794 = vadd.s32 %v792, %v793
        %v795 = vrot.slane %v794, 2
        %v796 = vadd.s32 %v794, %v795
        %v797 = vrot.slane %v796, 1
        %v798 = vadd.s32 %v796, %v797
        %s799 = vtos %v798
        %v800 = vstv %s774
        %vm801 = vcmp.ge.s32.totalorder %v385, %v800
        %v802 = vsel %vm801, 1, 0
        %v803 = vsel %vm304, %v802, 0
        %v804 = vand.u32 %v803, 65535
        %v805 = vshrl.u32 %v803, 16
        %v806 = vcvt.s32.f32 %v804
        %v807 = vcvt.s32.f32 %v805
        %808 = vadd.xlane.f32.xlu0 %v806
        %v809 = vpop.xlane.xlu0 %808
        %810 = vadd.xlane.f32.xlu0 %v807
        %v811 = vpop.xlane.xlu0 %810
        %v812 = vcvt.f32.s32 %v809
        %v813 = vcvt.f32.s32 %v811
        %v814 = vshll.u32 %v813, 16
        %v815 = vadd.s32 %v814, %v812
        %v816 = vrot.slane %v815, 4
        %v817 = vadd.s32 %v815, %v816
        %v818 = vrot.slane %v817, 2
        %v819 = vadd.s32 %v817, %v818
        %v820 = vrot.slane %v819, 1
        %v821 = vadd.s32 %v819, %v820
        %s822 = vtos %v821
        %v823 = vstv %s775
        %vm824 = vcmp.ge.s32.totalorder %v385, %v823
        %v825 = vsel %vm824, 1, 0
        %v826 = vsel %vm304, %v825, 0
        %v827 = vand.u32 %v826, 65535
        %v828 = vshrl.u32 %v826, 16
        %v829 = vcvt.s32.f32 %v827
        %v830 = vcvt.s32.f32 %v828
        %831 = vadd.xlane.f32.xlu0 %v829
        %v832 = vpop.xlane.xlu0 %831
        %833 = vadd.xlane.f32.xlu0 %v830
        %v834 = vpop.xlane.xlu0 %833
        %v835 = vcvt.f32.s32 %v832
        %v836 = vcvt.f32.s32 %v834
        %v837 = vshll.u32 %v836, 16
        %v838 = vadd.s32 %v837, %v835
        %v839 = vrot.slane %v838, 4
        %v840 = vadd.s32 %v838, %v839
        %v841 = vrot.slane %v840, 2
        %v842 = vadd.s32 %v840, %v841
        %v843 = vrot.slane %v842, 1
        %v844 = vadd.s32 %v842, %v843
        %s845 = vtos %v844
        %p846 = scmp.ge.s32.totalorder %s799, %s389
        %p847 = scmp.ge.s32.totalorder %s822, %s389
        %p848 = scmp.ge.s32.totalorder %s845, %s389
        %s849 = scalar_select %p848, %s775, %s773
        %s850 = scalar_select %p847, %s774, %s849
        %s851 = scalar_select %p846, %s776, %s850
        %s852 = sor.u32 %s851, 262144
        %s853 = sor.u32 %s851, 131072
        %s854 = sor.u32 %s852, 131072
        %v855 = vstv %s854
        %vm856 = vcmp.ge.s32.totalorder %v385, %v855
        %v857 = vsel %vm856, 1, 0
        %v858 = vsel %vm304, %v857, 0
        %v859 = vand.u32 %v858, 65535
        %v860 = vshrl.u32 %v858, 16
        %v861 = vcvt.s32.f32 %v859
        %v862 = vcvt.s32.f32 %v860
        %863 = vadd.xlane.f32.xlu0 %v861
        %v864 = vpop.xlane.xlu0 %863
        %865 = vadd.xlane.f32.xlu0 %v862
        %v866 = vpop.xlane.xlu0 %865
        %v867 = vcvt.f32.s32 %v864
        %v868 = vcvt.f32.s32 %v866
        %v869 = vshll.u32 %v868, 16
        %v870 = vadd.s32 %v869, %v867
        %v871 = vrot.slane %v870, 4
        %v872 = vadd.s32 %v870, %v871
        %v873 = vrot.slane %v872, 2
        %v874 = vadd.s32 %v872, %v873
        %v875 = vrot.slane %v874, 1
        %v876 = vadd.s32 %v874, %v875
        %s877 = vtos %v876
        %v878 = vstv %s852
        %vm879 = vcmp.ge.s32.totalorder %v385, %v878
        %v880 = vsel %vm879, 1, 0
        %v881 = vsel %vm304, %v880, 0
        %v882 = vand.u32 %v881, 65535
        %v883 = vshrl.u32 %v881, 16
        %v884 = vcvt.s32.f32 %v882
        %v885 = vcvt.s32.f32 %v883
        %886 = vadd.xlane.f32.xlu0 %v884
        %v887 = vpop.xlane.xlu0 %886
        %888 = vadd.xlane.f32.xlu0 %v885
        %v889 = vpop.xlane.xlu0 %888
        %v890 = vcvt.f32.s32 %v887
        %v891 = vcvt.f32.s32 %v889
        %v892 = vshll.u32 %v891, 16
        %v893 = vadd.s32 %v892, %v890
        %v894 = vrot.slane %v893, 4
        %v895 = vadd.s32 %v893, %v894
        %v896 = vrot.slane %v895, 2
        %v897 = vadd.s32 %v895, %v896
        %v898 = vrot.slane %v897, 1
        %v899 = vadd.s32 %v897, %v898
        %s900 = vtos %v899
        %v901 = vstv %s853
        %vm902 = vcmp.ge.s32.totalorder %v385, %v901
        %v903 = vsel %vm902, 1, 0
        %v904 = vsel %vm304, %v903, 0
        %v905 = vand.u32 %v904, 65535
        %v906 = vshrl.u32 %v904, 16
        %v907 = vcvt.s32.f32 %v905
        %v908 = vcvt.s32.f32 %v906
        %909 = vadd.xlane.f32.xlu0 %v907
        %v910 = vpop.xlane.xlu0 %909
        %911 = vadd.xlane.f32.xlu0 %v908
        %v912 = vpop.xlane.xlu0 %911
        %v913 = vcvt.f32.s32 %v910
        %v914 = vcvt.f32.s32 %v912
        %v915 = vshll.u32 %v914, 16
        %v916 = vadd.s32 %v915, %v913
        %v917 = vrot.slane %v916, 4
        %v918 = vadd.s32 %v916, %v917
        %v919 = vrot.slane %v918, 2
        %v920 = vadd.s32 %v918, %v919
        %v921 = vrot.slane %v920, 1
        %v922 = vadd.s32 %v920, %v921
        %s923 = vtos %v922
        %p924 = scmp.ge.s32.totalorder %s877, %s389
        %p925 = scmp.ge.s32.totalorder %s900, %s389
        %p926 = scmp.ge.s32.totalorder %s923, %s389
        %s927 = scalar_select %p926, %s853, %s851
        %s928 = scalar_select %p925, %s852, %s927
        %s929 = scalar_select %p924, %s854, %s928
        %s930 = sor.u32 %s929, 65536
        %s931 = sor.u32 %s929, 32768
        %s932 = sor.u32 %s930, 32768
        %v933 = vstv %s932
        %vm934 = vcmp.ge.s32.totalorder %v385, %v933
        %v935 = vsel %vm934, 1, 0
        %v936 = vsel %vm304, %v935, 0
        %v937 = vand.u32 %v936, 65535
        %v938 = vshrl.u32 %v936, 16
        %v939 = vcvt.s32.f32 %v937
        %v940 = vcvt.s32.f32 %v938
        %941 = vadd.xlane.f32.xlu0 %v939
        %v942 = vpop.xlane.xlu0 %941
        %943 = vadd.xlane.f32.xlu0 %v940
        %v944 = vpop.xlane.xlu0 %943
        %v945 = vcvt.f32.s32 %v942
        %v946 = vcvt.f32.s32 %v944
        %v947 = vshll.u32 %v946, 16
        %v948 = vadd.s32 %v947, %v945
        %v949 = vrot.slane %v948, 4
        %v950 = vadd.s32 %v948, %v949
        %v951 = vrot.slane %v950, 2
        %v952 = vadd.s32 %v950, %v951
        %v953 = vrot.slane %v952, 1
        %v954 = vadd.s32 %v952, %v953
        %s955 = vtos %v954
        %v956 = vstv %s930
        %vm957 = vcmp.ge.s32.totalorder %v385, %v956
        %v958 = vsel %vm957, 1, 0
        %v959 = vsel %vm304, %v958, 0
        %v960 = vand.u32 %v959, 65535
        %v961 = vshrl.u32 %v959, 16
        %v962 = vcvt.s32.f32 %v960
        %v963 = vcvt.s32.f32 %v961
        %964 = vadd.xlane.f32.xlu0 %v962
        %v965 = vpop.xlane.xlu0 %964
        %966 = vadd.xlane.f32.xlu0 %v963
        %v967 = vpop.xlane.xlu0 %966
        %v968 = vcvt.f32.s32 %v965
        %v969 = vcvt.f32.s32 %v967
        %v970 = vshll.u32 %v969, 16
        %v971 = vadd.s32 %v970, %v968
        %v972 = vrot.slane %v971, 4
        %v973 = vadd.s32 %v971, %v972
        %v974 = vrot.slane %v973, 2
        %v975 = vadd.s32 %v973, %v974
        %v976 = vrot.slane %v975, 1
        %v977 = vadd.s32 %v975, %v976
        %s978 = vtos %v977
        %v979 = vstv %s931
        %vm980 = vcmp.ge.s32.totalorder %v385, %v979
        %v981 = vsel %vm980, 1, 0
        %v982 = vsel %vm304, %v981, 0
        %v983 = vand.u32 %v982, 65535
        %v984 = vshrl.u32 %v982, 16
        %v985 = vcvt.s32.f32 %v983
        %v986 = vcvt.s32.f32 %v984
        %987 = vadd.xlane.f32.xlu0 %v985
        %v988 = vpop.xlane.xlu0 %987
        %989 = vadd.xlane.f32.xlu0 %v986
        %v990 = vpop.xlane.xlu0 %989
        %v991 = vcvt.f32.s32 %v988
        %v992 = vcvt.f32.s32 %v990
        %v993 = vshll.u32 %v992, 16
        %v994 = vadd.s32 %v993, %v991
        %v995 = vrot.slane %v994, 4
        %v996 = vadd.s32 %v994, %v995
        %v997 = vrot.slane %v996, 2
        %v998 = vadd.s32 %v996, %v997
        %v999 = vrot.slane %v998, 1
        %v1000 = vadd.s32 %v998, %v999
        %s1001 = vtos %v1000
        %p1002 = scmp.ge.s32.totalorder %s955, %s389
        %p1003 = scmp.ge.s32.totalorder %s978, %s389
        %p1004 = scmp.ge.s32.totalorder %s1001, %s389
        %s1005 = scalar_select %p1004, %s931, %s929
        %s1006 = scalar_select %p1003, %s930, %s1005
        %s1007 = scalar_select %p1002, %s932, %s1006
        %s1008 = sor.u32 %s1007, 16384
        %s1009 = sor.u32 %s1007, 8192
        %s1010 = sor.u32 %s1008, 8192
        %v1011 = vstv %s1010
        %vm1012 = vcmp.ge.s32.totalorder %v385, %v1011
        %v1013 = vsel %vm1012, 1, 0
        %v1014 = vsel %vm304, %v1013, 0
        %v1015 = vand.u32 %v1014, 65535
        %v1016 = vshrl.u32 %v1014, 16
        %v1017 = vcvt.s32.f32 %v1015
        %v1018 = vcvt.s32.f32 %v1016
        %1019 = vadd.xlane.f32.xlu0 %v1017
        %v1020 = vpop.xlane.xlu0 %1019
        %1021 = vadd.xlane.f32.xlu0 %v1018
        %v1022 = vpop.xlane.xlu0 %1021
        %v1023 = vcvt.f32.s32 %v1020
        %v1024 = vcvt.f32.s32 %v1022
        %v1025 = vshll.u32 %v1024, 16
        %v1026 = vadd.s32 %v1025, %v1023
        %v1027 = vrot.slane %v1026, 4
        %v1028 = vadd.s32 %v1026, %v1027
        %v1029 = vrot.slane %v1028, 2
        %v1030 = vadd.s32 %v1028, %v1029
        %v1031 = vrot.slane %v1030, 1
        %v1032 = vadd.s32 %v1030, %v1031
        %s1033 = vtos %v1032
        %v1034 = vstv %s1008
        %vm1035 = vcmp.ge.s32.totalorder %v385, %v1034
        %v1036 = vsel %vm1035, 1, 0
        %v1037 = vsel %vm304, %v1036, 0
        %v1038 = vand.u32 %v1037, 65535
        %v1039 = vshrl.u32 %v1037, 16
        %v1040 = vcvt.s32.f32 %v1038
        %v1041 = vcvt.s32.f32 %v1039
        %1042 = vadd.xlane.f32.xlu0 %v1040
        %v1043 = vpop.xlane.xlu0 %1042
        %1044 = vadd.xlane.f32.xlu0 %v1041
        %v1045 = vpop.xlane.xlu0 %1044
        %v1046 = vcvt.f32.s32 %v1043
        %v1047 = vcvt.f32.s32 %v1045
        %v1048 = vshll.u32 %v1047, 16
        %v1049 = vadd.s32 %v1048, %v1046
        %v1050 = vrot.slane %v1049, 4
        %v1051 = vadd.s32 %v1049, %v1050
        %v1052 = vrot.slane %v1051, 2
        %v1053 = vadd.s32 %v1051, %v1052
        %v1054 = vrot.slane %v1053, 1
        %v1055 = vadd.s32 %v1053, %v1054
        %s1056 = vtos %v1055
        %v1057 = vstv %s1009
        %vm1058 = vcmp.ge.s32.totalorder %v385, %v1057
        %v1059 = vsel %vm1058, 1, 0
        %v1060 = vsel %vm304, %v1059, 0
        %v1061 = vand.u32 %v1060, 65535
        %v1062 = vshrl.u32 %v1060, 16
        %v1063 = vcvt.s32.f32 %v1061
        %v1064 = vcvt.s32.f32 %v1062
        %1065 = vadd.xlane.f32.xlu0 %v1063
        %v1066 = vpop.xlane.xlu0 %1065
        %1067 = vadd.xlane.f32.xlu0 %v1064
        %v1068 = vpop.xlane.xlu0 %1067
        %v1069 = vcvt.f32.s32 %v1066
        %v1070 = vcvt.f32.s32 %v1068
        %v1071 = vshll.u32 %v1070, 16
        %v1072 = vadd.s32 %v1071, %v1069
        %v1073 = vrot.slane %v1072, 4
        %v1074 = vadd.s32 %v1072, %v1073
        %v1075 = vrot.slane %v1074, 2
        %v1076 = vadd.s32 %v1074, %v1075
        %v1077 = vrot.slane %v1076, 1
        %v1078 = vadd.s32 %v1076, %v1077
        %s1079 = vtos %v1078
        %p1080 = scmp.ge.s32.totalorder %s1033, %s389
        %p1081 = scmp.ge.s32.totalorder %s1056, %s389
        %p1082 = scmp.ge.s32.totalorder %s1079, %s389
        %s1083 = scalar_select %p1082, %s1009, %s1007
        %s1084 = scalar_select %p1081, %s1008, %s1083
        %s1085 = scalar_select %p1080, %s1010, %s1084
        %s1086 = sor.u32 %s1085, 4096
        %s1087 = sor.u32 %s1085, 2048
        %s1088 = sor.u32 %s1086, 2048
        %v1089 = vstv %s1088
        %vm1090 = vcmp.ge.s32.totalorder %v385, %v1089
        %v1091 = vsel %vm1090, 1, 0
        %v1092 = vsel %vm304, %v1091, 0
        %v1093 = vand.u32 %v1092, 65535
        %v1094 = vshrl.u32 %v1092, 16
        %v1095 = vcvt.s32.f32 %v1093
        %v1096 = vcvt.s32.f32 %v1094
        %1097 = vadd.xlane.f32.xlu0 %v1095
        %v1098 = vpop.xlane.xlu0 %1097
        %1099 = vadd.xlane.f32.xlu0 %v1096
        %v1100 = vpop.xlane.xlu0 %1099
        %v1101 = vcvt.f32.s32 %v1098
        %v1102 = vcvt.f32.s32 %v1100
        %v1103 = vshll.u32 %v1102, 16
        %v1104 = vadd.s32 %v1103, %v1101
        %v1105 = vrot.slane %v1104, 4
        %v1106 = vadd.s32 %v1104, %v1105
        %v1107 = vrot.slane %v1106, 2
        %v1108 = vadd.s32 %v1106, %v1107
        %v1109 = vrot.slane %v1108, 1
        %v1110 = vadd.s32 %v1108, %v1109
        %s1111 = vtos %v1110
        %v1112 = vstv %s1086
        %vm1113 = vcmp.ge.s32.totalorder %v385, %v1112
        %v1114 = vsel %vm1113, 1, 0
        %v1115 = vsel %vm304, %v1114, 0
        %v1116 = vand.u32 %v1115, 65535
        %v1117 = vshrl.u32 %v1115, 16
        %v1118 = vcvt.s32.f32 %v1116
        %v1119 = vcvt.s32.f32 %v1117
        %1120 = vadd.xlane.f32.xlu0 %v1118
        %v1121 = vpop.xlane.xlu0 %1120
        %1122 = vadd.xlane.f32.xlu0 %v1119
        %v1123 = vpop.xlane.xlu0 %1122
        %v1124 = vcvt.f32.s32 %v1121
        %v1125 = vcvt.f32.s32 %v1123
        %v1126 = vshll.u32 %v1125, 16
        %v1127 = vadd.s32 %v1126, %v1124
        %v1128 = vrot.slane %v1127, 4
        %v1129 = vadd.s32 %v1127, %v1128
        %v1130 = vrot.slane %v1129, 2
        %v1131 = vadd.s32 %v1129, %v1130
        %v1132 = vrot.slane %v1131, 1
        %v1133 = vadd.s32 %v1131, %v1132
        %s1134 = vtos %v1133
        %v1135 = vstv %s1087
        %vm1136 = vcmp.ge.s32.totalorder %v385, %v1135
        %v1137 = vsel %vm1136, 1, 0
        %v1138 = vsel %vm304, %v1137, 0
        %v1139 = vand.u32 %v1138, 65535
        %v1140 = vshrl.u32 %v1138, 16
        %v1141 = vcvt.s32.f32 %v1139
        %v1142 = vcvt.s32.f32 %v1140
        %1143 = vadd.xlane.f32.xlu0 %v1141
        %v1144 = vpop.xlane.xlu0 %1143
        %1145 = vadd.xlane.f32.xlu0 %v1142
        %v1146 = vpop.xlane.xlu0 %1145
        %v1147 = vcvt.f32.s32 %v1144
        %v1148 = vcvt.f32.s32 %v1146
        %v1149 = vshll.u32 %v1148, 16
        %v1150 = vadd.s32 %v1149, %v1147
        %v1151 = vrot.slane %v1150, 4
        %v1152 = vadd.s32 %v1150, %v1151
        %v1153 = vrot.slane %v1152, 2
        %v1154 = vadd.s32 %v1152, %v1153
        %v1155 = vrot.slane %v1154, 1
        %v1156 = vadd.s32 %v1154, %v1155
        %s1157 = vtos %v1156
        %p1158 = scmp.ge.s32.totalorder %s1111, %s389
        %p1159 = scmp.ge.s32.totalorder %s1134, %s389
        %p1160 = scmp.ge.s32.totalorder %s1157, %s389
        %s1161 = scalar_select %p1160, %s1087, %s1085
        %s1162 = scalar_select %p1159, %s1086, %s1161
        %s1163 = scalar_select %p1158, %s1088, %s1162
        %s1164 = sor.u32 %s1163, 1024
        %s1165 = sor.u32 %s1163, 512
        %s1166 = sor.u32 %s1164, 512
        %v1167 = vstv %s1166
        %vm1168 = vcmp.ge.s32.totalorder %v385, %v1167
        %v1169 = vsel %vm1168, 1, 0
        %v1170 = vsel %vm304, %v1169, 0
        %v1171 = vand.u32 %v1170, 65535
        %v1172 = vshrl.u32 %v1170, 16
        %v1173 = vcvt.s32.f32 %v1171
        %v1174 = vcvt.s32.f32 %v1172
        %1175 = vadd.xlane.f32.xlu0 %v1173
        %v1176 = vpop.xlane.xlu0 %1175
        %1177 = vadd.xlane.f32.xlu0 %v1174
        %v1178 = vpop.xlane.xlu0 %1177
        %v1179 = vcvt.f32.s32 %v1176
        %v1180 = vcvt.f32.s32 %v1178
        %v1181 = vshll.u32 %v1180, 16
        %v1182 = vadd.s32 %v1181, %v1179
        %v1183 = vrot.slane %v1182, 4
        %v1184 = vadd.s32 %v1182, %v1183
        %v1185 = vrot.slane %v1184, 2
        %v1186 = vadd.s32 %v1184, %v1185
        %v1187 = vrot.slane %v1186, 1
        %v1188 = vadd.s32 %v1186, %v1187
        %s1189 = vtos %v1188
        %v1190 = vstv %s1164
        %vm1191 = vcmp.ge.s32.totalorder %v385, %v1190
        %v1192 = vsel %vm1191, 1, 0
        %v1193 = vsel %vm304, %v1192, 0
        %v1194 = vand.u32 %v1193, 65535
        %v1195 = vshrl.u32 %v1193, 16
        %v1196 = vcvt.s32.f32 %v1194
        %v1197 = vcvt.s32.f32 %v1195
        %1198 = vadd.xlane.f32.xlu0 %v1196
        %v1199 = vpop.xlane.xlu0 %1198
        %1200 = vadd.xlane.f32.xlu0 %v1197
        %v1201 = vpop.xlane.xlu0 %1200
        %v1202 = vcvt.f32.s32 %v1199
        %v1203 = vcvt.f32.s32 %v1201
        %v1204 = vshll.u32 %v1203, 16
        %v1205 = vadd.s32 %v1204, %v1202
        %v1206 = vrot.slane %v1205, 4
        %v1207 = vadd.s32 %v1205, %v1206
        %v1208 = vrot.slane %v1207, 2
        %v1209 = vadd.s32 %v1207, %v1208
        %v1210 = vrot.slane %v1209, 1
        %v1211 = vadd.s32 %v1209, %v1210
        %s1212 = vtos %v1211
        %v1213 = vstv %s1165
        %vm1214 = vcmp.ge.s32.totalorder %v385, %v1213
        %v1215 = vsel %vm1214, 1, 0
        %v1216 = vsel %vm304, %v1215, 0
        %v1217 = vand.u32 %v1216, 65535
        %v1218 = vshrl.u32 %v1216, 16
        %v1219 = vcvt.s32.f32 %v1217
        %v1220 = vcvt.s32.f32 %v1218
        %1221 = vadd.xlane.f32.xlu0 %v1219
        %v1222 = vpop.xlane.xlu0 %1221
        %1223 = vadd.xlane.f32.xlu0 %v1220
        %v1224 = vpop.xlane.xlu0 %1223
        %v1225 = vcvt.f32.s32 %v1222
        %v1226 = vcvt.f32.s32 %v1224
        %v1227 = vshll.u32 %v1226, 16
        %v1228 = vadd.s32 %v1227, %v1225
        %v1229 = vrot.slane %v1228, 4
        %v1230 = vadd.s32 %v1228, %v1229
        %v1231 = vrot.slane %v1230, 2
        %v1232 = vadd.s32 %v1230, %v1231
        %v1233 = vrot.slane %v1232, 1
        %v1234 = vadd.s32 %v1232, %v1233
        %s1235 = vtos %v1234
        %p1236 = scmp.ge.s32.totalorder %s1189, %s389
        %p1237 = scmp.ge.s32.totalorder %s1212, %s389
        %p1238 = scmp.ge.s32.totalorder %s1235, %s389
        %s1239 = scalar_select %p1238, %s1165, %s1163
        %s1240 = scalar_select %p1237, %s1164, %s1239
        %s1241 = scalar_select %p1236, %s1166, %s1240
        %s1242 = sor.u32 %s1241, 256
        %s1243 = sor.u32 %s1241, 128
        %s1244 = sor.u32 %s1242, 128
        %v1245 = vstv %s1244
        %vm1246 = vcmp.ge.s32.totalorder %v385, %v1245
        %v1247 = vsel %vm1246, 1, 0
        %v1248 = vsel %vm304, %v1247, 0
        %v1249 = vand.u32 %v1248, 65535
        %v1250 = vshrl.u32 %v1248, 16
        %v1251 = vcvt.s32.f32 %v1249
        %v1252 = vcvt.s32.f32 %v1250
        %1253 = vadd.xlane.f32.xlu0 %v1251
        %v1254 = vpop.xlane.xlu0 %1253
        %1255 = vadd.xlane.f32.xlu0 %v1252
        %v1256 = vpop.xlane.xlu0 %1255
        %v1257 = vcvt.f32.s32 %v1254
        %v1258 = vcvt.f32.s32 %v1256
        %v1259 = vshll.u32 %v1258, 16
        %v1260 = vadd.s32 %v1259, %v1257
        %v1261 = vrot.slane %v1260, 4
        %v1262 = vadd.s32 %v1260, %v1261
        %v1263 = vrot.slane %v1262, 2
        %v1264 = vadd.s32 %v1262, %v1263
        %v1265 = vrot.slane %v1264, 1
        %v1266 = vadd.s32 %v1264, %v1265
        %s1267 = vtos %v1266
        %v1268 = vstv %s1242
        %vm1269 = vcmp.ge.s32.totalorder %v385, %v1268
        %v1270 = vsel %vm1269, 1, 0
        %v1271 = vsel %vm304, %v1270, 0
        %v1272 = vand.u32 %v1271, 65535
        %v1273 = vshrl.u32 %v1271, 16
        %v1274 = vcvt.s32.f32 %v1272
        %v1275 = vcvt.s32.f32 %v1273
        %1276 = vadd.xlane.f32.xlu0 %v1274
        %v1277 = vpop.xlane.xlu0 %1276
        %1278 = vadd.xlane.f32.xlu0 %v1275
        %v1279 = vpop.xlane.xlu0 %1278
        %v1280 = vcvt.f32.s32 %v1277
        %v1281 = vcvt.f32.s32 %v1279
        %v1282 = vshll.u32 %v1281, 16
        %v1283 = vadd.s32 %v1282, %v1280
        %v1284 = vrot.slane %v1283, 4
        %v1285 = vadd.s32 %v1283, %v1284
        %v1286 = vrot.slane %v1285, 2
        %v1287 = vadd.s32 %v1285, %v1286
        %v1288 = vrot.slane %v1287, 1
        %v1289 = vadd.s32 %v1287, %v1288
        %s1290 = vtos %v1289
        %v1291 = vstv %s1243
        %vm1292 = vcmp.ge.s32.totalorder %v385, %v1291
        %v1293 = vsel %vm1292, 1, 0
        %v1294 = vsel %vm304, %v1293, 0
        %v1295 = vand.u32 %v1294, 65535
        %v1296 = vshrl.u32 %v1294, 16
        %v1297 = vcvt.s32.f32 %v1295
        %v1298 = vcvt.s32.f32 %v1296
        %1299 = vadd.xlane.f32.xlu0 %v1297
        %v1300 = vpop.xlane.xlu0 %1299
        %1301 = vadd.xlane.f32.xlu0 %v1298
        %v1302 = vpop.xlane.xlu0 %1301
        %v1303 = vcvt.f32.s32 %v1300
        %v1304 = vcvt.f32.s32 %v1302
        %v1305 = vshll.u32 %v1304, 16
        %v1306 = vadd.s32 %v1305, %v1303
        %v1307 = vrot.slane %v1306, 4
        %v1308 = vadd.s32 %v1306, %v1307
        %v1309 = vrot.slane %v1308, 2
        %v1310 = vadd.s32 %v1308, %v1309
        %v1311 = vrot.slane %v1310, 1
        %v1312 = vadd.s32 %v1310, %v1311
        %s1313 = vtos %v1312
        %p1314 = scmp.ge.s32.totalorder %s1267, %s389
        %p1315 = scmp.ge.s32.totalorder %s1290, %s389
        %p1316 = scmp.ge.s32.totalorder %s1313, %s389
        %s1317 = scalar_select %p1316, %s1243, %s1241
        %s1318 = scalar_select %p1315, %s1242, %s1317
        %s1319 = scalar_select %p1314, %s1244, %s1318
        %s1320 = sor.u32 %s1319, 64
        %s1321 = sor.u32 %s1319, 32
        %s1322 = sor.u32 %s1320, 32
        %v1323 = vstv %s1322
        %vm1324 = vcmp.ge.s32.totalorder %v385, %v1323
        %v1325 = vsel %vm1324, 1, 0
        %v1326 = vsel %vm304, %v1325, 0
        %v1327 = vand.u32 %v1326, 65535
        %v1328 = vshrl.u32 %v1326, 16
        %v1329 = vcvt.s32.f32 %v1327
        %v1330 = vcvt.s32.f32 %v1328
        %1331 = vadd.xlane.f32.xlu0 %v1329
        %v1332 = vpop.xlane.xlu0 %1331
        %1333 = vadd.xlane.f32.xlu0 %v1330
        %v1334 = vpop.xlane.xlu0 %1333
        %v1335 = vcvt.f32.s32 %v1332
        %v1336 = vcvt.f32.s32 %v1334
        %v1337 = vshll.u32 %v1336, 16
        %v1338 = vadd.s32 %v1337, %v1335
        %v1339 = vrot.slane %v1338, 4
        %v1340 = vadd.s32 %v1338, %v1339
        %v1341 = vrot.slane %v1340, 2
        %v1342 = vadd.s32 %v1340, %v1341
        %v1343 = vrot.slane %v1342, 1
        %v1344 = vadd.s32 %v1342, %v1343
        %s1345 = vtos %v1344
        %v1346 = vstv %s1320
        %vm1347 = vcmp.ge.s32.totalorder %v385, %v1346
        %v1348 = vsel %vm1347, 1, 0
        %v1349 = vsel %vm304, %v1348, 0
        %v1350 = vand.u32 %v1349, 65535
        %v1351 = vshrl.u32 %v1349, 16
        %v1352 = vcvt.s32.f32 %v1350
        %v1353 = vcvt.s32.f32 %v1351
        %1354 = vadd.xlane.f32.xlu0 %v1352
        %v1355 = vpop.xlane.xlu0 %1354
        %1356 = vadd.xlane.f32.xlu0 %v1353
        %v1357 = vpop.xlane.xlu0 %1356
        %v1358 = vcvt.f32.s32 %v1355
        %v1359 = vcvt.f32.s32 %v1357
        %v1360 = vshll.u32 %v1359, 16
        %v1361 = vadd.s32 %v1360, %v1358
        %v1362 = vrot.slane %v1361, 4
        %v1363 = vadd.s32 %v1361, %v1362
        %v1364 = vrot.slane %v1363, 2
        %v1365 = vadd.s32 %v1363, %v1364
        %v1366 = vrot.slane %v1365, 1
        %v1367 = vadd.s32 %v1365, %v1366
        %s1368 = vtos %v1367
        %v1369 = vstv %s1321
        %vm1370 = vcmp.ge.s32.totalorder %v385, %v1369
        %v1371 = vsel %vm1370, 1, 0
        %v1372 = vsel %vm304, %v1371, 0
        %v1373 = vand.u32 %v1372, 65535
        %v1374 = vshrl.u32 %v1372, 16
        %v1375 = vcvt.s32.f32 %v1373
        %v1376 = vcvt.s32.f32 %v1374
        %1377 = vadd.xlane.f32.xlu0 %v1375
        %v1378 = vpop.xlane.xlu0 %1377
        %1379 = vadd.xlane.f32.xlu0 %v1376
        %v1380 = vpop.xlane.xlu0 %1379
        %v1381 = vcvt.f32.s32 %v1378
        %v1382 = vcvt.f32.s32 %v1380
        %v1383 = vshll.u32 %v1382, 16
        %v1384 = vadd.s32 %v1383, %v1381
        %v1385 = vrot.slane %v1384, 4
        %v1386 = vadd.s32 %v1384, %v1385
        %v1387 = vrot.slane %v1386, 2
        %v1388 = vadd.s32 %v1386, %v1387
        %v1389 = vrot.slane %v1388, 1
        %v1390 = vadd.s32 %v1388, %v1389
        %s1391 = vtos %v1390
        %p1392 = scmp.ge.s32.totalorder %s1345, %s389
        %p1393 = scmp.ge.s32.totalorder %s1368, %s389
        %p1394 = scmp.ge.s32.totalorder %s1391, %s389
        %s1395 = scalar_select %p1394, %s1321, %s1319
        %s1396 = scalar_select %p1393, %s1320, %s1395
        %s1397 = scalar_select %p1392, %s1322, %s1396
        %s1398 = sor.u32 %s1397, 16
        %s1399 = sor.u32 %s1397, 8
        %s1400 = sor.u32 %s1398, 8
        %v1401 = vstv %s1400
        %vm1402 = vcmp.ge.s32.totalorder %v385, %v1401
        %v1403 = vsel %vm1402, 1, 0
        %v1404 = vsel %vm304, %v1403, 0
        %v1405 = vand.u32 %v1404, 65535
        %v1406 = vshrl.u32 %v1404, 16
        %v1407 = vcvt.s32.f32 %v1405
        %v1408 = vcvt.s32.f32 %v1406
        %1409 = vadd.xlane.f32.xlu0 %v1407
        %v1410 = vpop.xlane.xlu0 %1409
        %1411 = vadd.xlane.f32.xlu0 %v1408
        %v1412 = vpop.xlane.xlu0 %1411
        %v1413 = vcvt.f32.s32 %v1410
        %v1414 = vcvt.f32.s32 %v1412
        %v1415 = vshll.u32 %v1414, 16
        %v1416 = vadd.s32 %v1415, %v1413
        %v1417 = vrot.slane %v1416, 4
        %v1418 = vadd.s32 %v1416, %v1417
        %v1419 = vrot.slane %v1418, 2
        %v1420 = vadd.s32 %v1418, %v1419
        %v1421 = vrot.slane %v1420, 1
        %v1422 = vadd.s32 %v1420, %v1421
        %s1423 = vtos %v1422
        %v1424 = vstv %s1398
        %vm1425 = vcmp.ge.s32.totalorder %v385, %v1424
        %v1426 = vsel %vm1425, 1, 0
        %v1427 = vsel %vm304, %v1426, 0
        %v1428 = vand.u32 %v1427, 65535
        %v1429 = vshrl.u32 %v1427, 16
        %v1430 = vcvt.s32.f32 %v1428
        %v1431 = vcvt.s32.f32 %v1429
        %1432 = vadd.xlane.f32.xlu0 %v1430
        %v1433 = vpop.xlane.xlu0 %1432
        %1434 = vadd.xlane.f32.xlu0 %v1431
        %v1435 = vpop.xlane.xlu0 %1434
        %v1436 = vcvt.f32.s32 %v1433
        %v1437 = vcvt.f32.s32 %v1435
        %v1438 = vshll.u32 %v1437, 16
        %v1439 = vadd.s32 %v1438, %v1436
        %v1440 = vrot.slane %v1439, 4
        %v1441 = vadd.s32 %v1439, %v1440
        %v1442 = vrot.slane %v1441, 2
        %v1443 = vadd.s32 %v1441, %v1442
        %v1444 = vrot.slane %v1443, 1
        %v1445 = vadd.s32 %v1443, %v1444
        %s1446 = vtos %v1445
        %v1447 = vstv %s1399
        %vm1448 = vcmp.ge.s32.totalorder %v385, %v1447
        %v1449 = vsel %vm1448, 1, 0
        %v1450 = vsel %vm304, %v1449, 0
        %v1451 = vand.u32 %v1450, 65535
        %v1452 = vshrl.u32 %v1450, 16
        %v1453 = vcvt.s32.f32 %v1451
        %v1454 = vcvt.s32.f32 %v1452
        %1455 = vadd.xlane.f32.xlu0 %v1453
        %v1456 = vpop.xlane.xlu0 %1455
        %1457 = vadd.xlane.f32.xlu0 %v1454
        %v1458 = vpop.xlane.xlu0 %1457
        %v1459 = vcvt.f32.s32 %v1456
        %v1460 = vcvt.f32.s32 %v1458
        %v1461 = vshll.u32 %v1460, 16
        %v1462 = vadd.s32 %v1461, %v1459
        %v1463 = vrot.slane %v1462, 4
        %v1464 = vadd.s32 %v1462, %v1463
        %v1465 = vrot.slane %v1464, 2
        %v1466 = vadd.s32 %v1464, %v1465
        %v1467 = vrot.slane %v1466, 1
        %v1468 = vadd.s32 %v1466, %v1467
        %s1469 = vtos %v1468
        %p1470 = scmp.ge.s32.totalorder %s1423, %s389
        %p1471 = scmp.ge.s32.totalorder %s1446, %s389
        %p1472 = scmp.ge.s32.totalorder %s1469, %s389
        %s1473 = scalar_select %p1472, %s1399, %s1397
        %s1474 = scalar_select %p1471, %s1398, %s1473
        %s1475 = scalar_select %p1470, %s1400, %s1474
        %s1476 = sor.u32 %s1475, 4
        %s1477 = sor.u32 %s1475, 2
        %s1478 = sor.u32 %s1476, 2
        %v1479 = vstv %s1478
        %vm1480 = vcmp.ge.s32.totalorder %v385, %v1479
        %v1481 = vsel %vm1480, 1, 0
        %v1482 = vsel %vm304, %v1481, 0
        %v1483 = vand.u32 %v1482, 65535
        %v1484 = vshrl.u32 %v1482, 16
        %v1485 = vcvt.s32.f32 %v1483
        %v1486 = vcvt.s32.f32 %v1484
        %1487 = vadd.xlane.f32.xlu0 %v1485
        %v1488 = vpop.xlane.xlu0 %1487
        %1489 = vadd.xlane.f32.xlu0 %v1486
        %v1490 = vpop.xlane.xlu0 %1489
        %v1491 = vcvt.f32.s32 %v1488
        %v1492 = vcvt.f32.s32 %v1490
        %v1493 = vshll.u32 %v1492, 16
        %v1494 = vadd.s32 %v1493, %v1491
        %v1495 = vrot.slane %v1494, 4
        %v1496 = vadd.s32 %v1494, %v1495
        %v1497 = vrot.slane %v1496, 2
        %v1498 = vadd.s32 %v1496, %v1497
        %v1499 = vrot.slane %v1498, 1
        %v1500 = vadd.s32 %v1498, %v1499
        %s1501 = vtos %v1500
        %v1502 = vstv %s1476
        %vm1503 = vcmp.ge.s32.totalorder %v385, %v1502
        %v1504 = vsel %vm1503, 1, 0
        %v1505 = vsel %vm304, %v1504, 0
        %v1506 = vand.u32 %v1505, 65535
        %v1507 = vshrl.u32 %v1505, 16
        %v1508 = vcvt.s32.f32 %v1506
        %v1509 = vcvt.s32.f32 %v1507
        %1510 = vadd.xlane.f32.xlu0 %v1508
        %v1511 = vpop.xlane.xlu0 %1510
        %1512 = vadd.xlane.f32.xlu0 %v1509
        %v1513 = vpop.xlane.xlu0 %1512
        %v1514 = vcvt.f32.s32 %v1511
        %v1515 = vcvt.f32.s32 %v1513
        %v1516 = vshll.u32 %v1515, 16
        %v1517 = vadd.s32 %v1516, %v1514
        %v1518 = vrot.slane %v1517, 4
        %v1519 = vadd.s32 %v1517, %v1518
        %v1520 = vrot.slane %v1519, 2
        %v1521 = vadd.s32 %v1519, %v1520
        %v1522 = vrot.slane %v1521, 1
        %v1523 = vadd.s32 %v1521, %v1522
        %s1524 = vtos %v1523
        %v1525 = vstv %s1477
        %vm1526 = vcmp.ge.s32.totalorder %v385, %v1525
        %v1527 = vsel %vm1526, 1, 0
        %v1528 = vsel %vm304, %v1527, 0
        %v1529 = vand.u32 %v1528, 65535
        %v1530 = vshrl.u32 %v1528, 16
        %v1531 = vcvt.s32.f32 %v1529
        %v1532 = vcvt.s32.f32 %v1530
        %1533 = vadd.xlane.f32.xlu0 %v1531
        %v1534 = vpop.xlane.xlu0 %1533
        %1535 = vadd.xlane.f32.xlu0 %v1532
        %v1536 = vpop.xlane.xlu0 %1535
        %v1537 = vcvt.f32.s32 %v1534
        %v1538 = vcvt.f32.s32 %v1536
        %v1539 = vshll.u32 %v1538, 16
        %v1540 = vadd.s32 %v1539, %v1537
        %v1541 = vrot.slane %v1540, 4
        %v1542 = vadd.s32 %v1540, %v1541
        %v1543 = vrot.slane %v1542, 2
        %v1544 = vadd.s32 %v1542, %v1543
        %v1545 = vrot.slane %v1544, 1
        %v1546 = vadd.s32 %v1544, %v1545
        %s1547 = vtos %v1546
        %p1548 = scmp.ge.s32.totalorder %s1501, %s389
        %p1549 = scmp.ge.s32.totalorder %s1524, %s389
        %p1550 = scmp.ge.s32.totalorder %s1547, %s389
        %s1551 = scalar_select %p1550, %s1477, %s1475
        %s1552 = scalar_select %p1549, %s1476, %s1551
        %s1553 = scalar_select %p1548, %s1478, %s1552
        %s1554 = sor.u32 %s1553, 1
        %v1555 = vstv %s1554
        %vm1556 = vcmp.ge.s32.totalorder %v385, %v1555
        %v1557 = vsel %vm1556, 1, 0
        %v1558 = vsel %vm304, %v1557, 0
        %v1559 = vand.u32 %v1558, 65535
        %v1560 = vshrl.u32 %v1558, 16
        %v1561 = vcvt.s32.f32 %v1559
        %v1562 = vcvt.s32.f32 %v1560
        %1563 = vadd.xlane.f32.xlu0 %v1561
        %v1564 = vpop.xlane.xlu0 %1563
        %1565 = vadd.xlane.f32.xlu0 %v1562
        %v1566 = vpop.xlane.xlu0 %1565
        %v1567 = vcvt.f32.s32 %v1564
        %v1568 = vcvt.f32.s32 %v1566
        %v1569 = vshll.u32 %v1568, 16
        %v1570 = vadd.s32 %v1569, %v1567
        %v1571 = vrot.slane %v1570, 4
        %v1572 = vadd.s32 %v1570, %v1571
        %v1573 = vrot.slane %v1572, 2
        %v1574 = vadd.s32 %v1572, %v1573
        %v1575 = vrot.slane %v1574, 1
        %v1576 = vadd.s32 %v1574, %v1575
        %s1577 = vtos %v1576
        %p1578 = scmp.ge.s32.totalorder %s1577, %s389
        %s1579 = scalar_select %p1578, %s1554, %s1553
        %v1580 = vstv %s1579
        %vm1581 = vcmp.gt.s32.totalorder %v385, %v1580
        %v1582 = vsel %vm1581, 1, 0
        %v1583 = vsel %vm304, %v1582, 0
        %v1584 = vand.u32 %v1583, 65535
        %v1585 = vshrl.u32 %v1583, 16
        %v1586 = vcvt.s32.f32 %v1584
        %v1587 = vcvt.s32.f32 %v1585
        %1588 = vadd.xlane.f32.xlu0 %v1586
        %v1589 = vpop.xlane.xlu0 %1588
        %1590 = vadd.xlane.f32.xlu0 %v1587
        %v1591 = vpop.xlane.xlu0 %1590
        %v1592 = vcvt.f32.s32 %v1589
        %v1593 = vcvt.f32.s32 %v1591
        %v1594 = vshll.u32 %v1593, 16
        %v1595 = vadd.s32 %v1594, %v1592
        %v1596 = vrot.slane %v1595, 4
        %v1597 = vadd.s32 %v1595, %v1596
        %v1598 = vrot.slane %v1597, 2
        %v1599 = vadd.s32 %v1597, %v1598
        %v1600 = vrot.slane %v1599, 1
        %v1601 = vadd.s32 %v1599, %v1600
        %s1602 = vtos %v1601
        %v1603 = vsel %vm1581, %v385, 0.0
        %v1604 = vsel %vm304, %v1603, 0.0
        %1605 = vadd.xlane.f32.xlu0 %v1604
        %v1606 = vpop.xlane.xlu0 %1605
        %v1607 = vrot.slane %v1606, 4
        %v1608 = vadd.f32 %v1606, %v1607
        %v1609 = vrot.slane %v1608, 2
        %v1610 = vadd.f32 %v1608, %v1609
        %v1611 = vrot.slane %v1610, 1
        %v1612 = vadd.f32 %v1610, %v1611
        %s1613 = vtos %v1612
        %vm1614 = vcmp.eq.s32.totalorder %v385, %v1580
        %v1615 = vsel %vm1614, %v385, 0.0
        %v1616 = vsel %vm304, %v1615, -inf
        %1617 = vmax.xlane.f32.xlu0 %v1616
        %v1618 = vpop.xlane.xlu0 %1617
        %v1619 = vrot.slane %v1618, 4
        %v1620 = vmax.f32 %v1618, %v1619
        %v1621 = vrot.slane %v1620, 2
        %v1622 = vmax.f32 %v1620, %v1621
        %v1623 = vrot.slane %v1622, 1
        %v1624 = vmax.f32 %v1622, %v1623
        %s1625 = vtos %v1624
        %s1626 = ssub.s32 %s389, %s1602
        %s1627 = scvt.s32.f32 %s1626
        %s1628 = smul.f32 %s1627, %s1625
        %s1629 = sadd.f32 %s1613, %s1628
        %v1630 = vmul.f32 %v383, %v303
        %v1631 = vsel %vm304, %v1630, 0.0
        %1632 = vadd.xlane.f32.xlu0 %v1631
        %v1633 = vpop.xlane.xlu0 %1632
        %v1634 = vrot.slane %v1633, 4
        %v1635 = vadd.f32 %v1633, %v1634
        %v1636 = vrot.slane %v1635, 2
        %v1637 = vadd.f32 %v1635, %v1636
        %v1638 = vrot.slane %v1637, 1
        %v1639 = vadd.f32 %v1637, %v1638
        %s1640 = vtos %v1639
        %s1641 = sadd.f32 %s1640, %s1629
        %v1642 = vlaneseq
        %v1643 = vand.u32 %v1642, 127
        %vm1644 = vcmp.eq.s32.totalorder %v1643, 0
        %v1645 = vstv %s350
        %v1646 = vsel %vm1644, %v1645, 0.0
        %vm1647 = vcmp.eq.s32.totalorder %v1643, 1
        %v1648 = vstv %s1641
        %v1649 = vsel %vm1647, %v1648, 0.0
        %v1650 = vadd.f32 %v1646, %v1649
        %vm1651 = vcmp.eq.s32.totalorder %v1643, 2
        %v1652 = vstv %s325
        %v1653 = vsel %vm1651, %v1652, 0.0
        %v1654 = vadd.f32 %v1650, %v1653
        %1655 = vst [vmem:[%s293] sm:$0x1] %v1654
        %s1656 = sand.u32 %s136, 1
        %s1657 = scalar_lea.sflag [#allocation4], %s1656
        %s1658 = sand.u32 %s136, 1
        %s1659 = scalar_lea.vmem [#allocation8], %s1658
        // Predicated region
        $region49: #{tpu_custom_call.1} parent=35 // pred_check
          %p1660 = pneg %p146
        $region50: #{tpu_custom_call.1} parent=35 // pred_check_branch
          %1662 = sbr.rel (%p1660) target = $region52
        $region51: #{tpu_custom_call.1} parent=35 // pred_region
          %s1664 = ssub.s32 16, 16
          %1665 = vsyncadd %s1657, %s1664
          %s1666 = smul.addr %s24, 16
          %s1667 = scalar_lea.hbm %s4, %s1666
          %s1669 = sshll.u32 %s1659, 4
          %s1670 = int_to_ptr.vmem [resolvable:$true] %s1669
          %1672 = dma.vmem_to_hbm [thread:$0]  %s1670, 16, %s1667, %s1657
        $region52: #{tpu_custom_call.1} parent=35 // pred_fallthru
          _
      $region36: #{tpu_custom_call.1} parent=5 // pred_fallthru
        _
      %p1673 = scmp.le.s32.totalorder 2, %s19
      // Predicated region
      $region53: #{tpu_custom_call.1} parent=5 // pred_check
        %p1674 = pneg %p1673
      $region54: #{tpu_custom_call.1} parent=5 // pred_check_branch
        %1676 = sbr.rel (%p1674) target = $region56
      $region55: #{tpu_custom_call.1} parent=5 // pred_region
        %s1677 = ssub.s32 %s19, 2
        // Predicated region
        $region57: #{tpu_custom_call.1} parent=55 // pred_check
          %p1678 = pneg %p152
        $region58: #{tpu_custom_call.1} parent=55 // pred_check_branch
          %1680 = sbr.rel (%p1678) target = $region60
        $region59: #{tpu_custom_call.1} parent=55 // pred_region
          %s1681 = sand.u32 %s137, 1
          %s1682 = scalar_lea.sflag [#allocation4], %s1681
          %s1683 = sand.u32 %s137, 1
          %s1684 = scalar_lea.vmem [#allocation8], %s1683
          %1685 = dma.done %s1682, 16
        $region60: #{tpu_custom_call.1} parent=55 // pred_fallthru
          _
      $region56: #{tpu_custom_call.1} parent=5 // pred_fallthru
        _
    $region6: #{tpu_custom_call.1} parent=1 // loop_footer
      %s23 = sadd.s32 1, %s19
    $region7: #{tpu_custom_call.1} parent=1 // loop_footer_branch
      %18 = sbr.rel target = $region3
    $region8: #{tpu_custom_call.1} parent=1 // loop_exit
      _
    %1686 = vsyncpa [#allocation3], 1
    %s1687 = scalar_lea.sflag [#allocation3], 1
    %1688 = vsyncpa %s1687, 1
    %1689 = vsyncpa [#allocation6], 1
    %s1690 = scalar_lea.sflag [#allocation6], 1
    %1691 = vsyncpa %s1690, 1
    %1692 = vsyncpa [#allocation4], 1
    %s1693 = scalar_lea.sflag [#allocation4], 1
    %1694 = vsyncpa %s1693, 1

</llo_original>
